<compile_context>
chip_gen: v7x
topology: tpu7x:2x2x1
jax: 0.10.0
libtpu: 0.0.40
codegen_flags: <defaults>
</compile_context>

<pallas_src>
import jax
import jax.numpy as jnp
import numpy as np
from jax import lax
from jax.experimental import pallas as pl
from jax.experimental.pallas import tpu as pltpu

INPUT_DIM = 6
HIDDEN_DIMS = (16, 8)
NUM_CLASSES = 2
BN_EPS = 1e-5

PACK = 8                                  # samples packed per sublane row
PACKED_IN = PACK * INPUT_DIM              # 48 lanes of x per row
PACKED_H1 = PACK * HIDDEN_DIMS[0]         # 128
PACKED_H2 = PACK * HIDDEN_DIMS[1]         # 64
PACKED_OUT = PACK * NUM_CLASSES           # 16

MAX_ROW_TILE = 4096                       # packed rows per grid step = 32768 samples (~1 MiB HBM)
VMEM_LIMIT_BYTES = 48 * 1024 * 1024       # covers double-buffered blocks + temps; < v7x 64 MiB


def _mlp_softmax_kernel(x_ref, w1_ref, b1_ref, w2_ref, b2_ref, w3_ref, b3_ref, o_ref):
    """One batch tile in the packed layout.

    x_ref: [R, 48]  (8 samples x 6 features per row)
    w*_ref: 8-way block-diagonal weights, b*_ref: 8-way tiled biases.
    o_ref: [R, 16]  (8 samples x 2 class probabilities per row)
    """
    x = x_ref[...]                                                        # [R, 48]

    h = jnp.dot(x, w1_ref[...], precision=lax.Precision.HIGHEST,
                preferred_element_type=jnp.float32) + b1_ref[...]        # [R, 128]
    h = jnp.maximum(h, 0.0)

    h = jnp.dot(h, w2_ref[...], precision=lax.Precision.HIGHEST,
                preferred_element_type=jnp.float32) + b2_ref[...]        # [R, 64]
    h = jnp.maximum(h, 0.0)

    # Last layer already produces the per-class logit difference d_c = l_c - l_{1-c}
    # (folded in the wrapper), so softmax reduces to an elementwise sigmoid.
    d = jnp.dot(h, w3_ref[...], precision=lax.Precision.HIGHEST,
                preferred_element_type=jnp.float32) + b3_ref[...]        # [R, 16]

    o_ref[...] = 1.0 / (1.0 + jnp.exp(-d))                               # single packed store


def _forward_packed(xp, fp, row_tile):
    """Run the kernel over packed x [rows, 48] -> packed probs [rows, 16]."""
    rows = xp.shape[0]
    grid = (pl.cdiv(rows, row_tile),)                 # partial last block masked by Pallas
    const = lambda shape: pl.BlockSpec(shape, lambda i: (0, 0))   # VMEM-resident params
    return pl.pallas_call(
        _mlp_softmax_kernel,
        out_shape=jax.ShapeDtypeStruct((rows, PACKED_OUT), jnp.float32),
        grid=grid,
        in_specs=[
            pl.BlockSpec((row_tile, PACKED_IN), lambda i: (i, 0)),   # lane-dense x tile
            const((PACKED_IN, PACKED_H1)),
            const((1, PACKED_H1)),
            const((PACKED_H1, PACKED_H2)),
            const((1, PACKED_H2)),
            const((PACKED_H2, PACKED_OUT)),
            const((1, PACKED_OUT)),
        ],
        out_specs=pl.BlockSpec((row_tile, PACKED_OUT), lambda i: (i, 0)),
        compiler_params=pltpu.CompilerParams(
            dimension_semantics=("parallel",),        # shard grid steps across TCs (v7x)
            vmem_limit_bytes=VMEM_LIMIT_BYTES,
        ),
    )(xp, fp["w1"], fp["b1"], fp["w2"], fp["b2"], fp["w3"], fp["b3"])


@jax.jit
def personalized_behavior_classifier(x, fp):
    """x: [B, 6] float32 -> probs [B, 2] float32. `fp` is the output of fold_params()."""
    B = x.shape[0]
    pad = (-B) % PACK
    if pad:  # rare path: only when B is not a multiple of 8 (static under jit)
        x = jnp.pad(x, ((0, pad), (0, 0)))
    xp = x.reshape(-1, PACKED_IN)                     # free, contiguous reshape: [B/8, 48]
    rows = xp.shape[0]
    row_tile = rows if rows <= MAX_ROW_TILE else MAX_ROW_TILE
    probs_packed = _forward_packed(xp, fp, row_tile)  # [rows, 16]
    probs = probs_packed.reshape(-1, NUM_CLASSES)     # free reshape to [B_padded, 2]
    return probs[:B] if pad else probs


def fold_params(params):
    """Fold eval-mode BatchNorm1d into the following Linears, fold the 2-class softmax into
    the last Linear as a logit difference, and expand everything into the 8-way packed
    (block-diagonal / tiled) layout used by the kernel.  Done once, in float64 numpy."""
    p = {k: np.asarray(v, np.float64) for k, v in params.items()}
    w1, b1 = p["w1"], p["b1"]                 # [6,16], [1,16]
    w2, b2 = p["w2"], p["b2"]                 # [16,8], [1,8]
    w3, b3 = p["w3"], p["b3"]                 # [8,2],  [1,2]

    s1 = p["g1"] / np.sqrt(p["v1"] + BN_EPS); t1 = p["be1"] - p["m1"] * s1
    s2 = p["g2"] / np.sqrt(p["v2"] + BN_EPS); t2 = p["be2"] - p["m2"] * s2

    w2f = w2 * s1.T                           # BN1 folded into Linear2
    b2f = t1 @ w2 + b2
    w3f = w3 * s2.T                           # BN2 folded into Linear3
    b3f = t2 @ w3 + b3

    # softmax over 2 classes: p_c = sigmoid(l_c - l_{1-c}); fold the difference into layer 3.
    D = np.array([[1.0, -1.0], [-1.0, 1.0]])
    w3d = w3f @ D
    b3d = b3f @ D

    eye = np.eye(PACK)
    bd = lambda w: jnp.asarray(np.kron(eye, w), jnp.float32)                 # block-diagonal
    tb = lambda b: jnp.asarray(np.tile(b.reshape(1, -1), (1, PACK)), jnp.float32)  # tiled bias

    return dict(w1=bd(w1), b1=tb(b1),     # [48,128], [1,128]
                w2=bd(w2f), b2=tb(b2f),   # [128,64], [1,64]
                w3=bd(w3d), b3=tb(b3d))   # [64,16],  [1,16]


def init_params(key):
    """Deterministic synthetic parameters (shapes match the torch module)."""
    ks = jax.random.split(key, 8)
    d0, d1, d2 = INPUT_DIM, HIDDEN_DIMS[0], HIDDEN_DIMS[1]

    def lin(k, fan_in, fan_out):
        bound = 1.0 / np.sqrt(fan_in)
        kw, kb = jax.random.split(k)
        # stored as [in, out]  (torch stores [out, in]; reference uses x @ W)
        w = jax.random.uniform(kw, (fan_in, fan_out), jnp.float32, -bound, bound)
        b = jax.random.uniform(kb, (1, fan_out), jnp.float32, -bound, bound)
        return w, b

    w1, b1 = lin(ks[0], d0, d1)
    w2, b2 = lin(ks[1], d1, d2)
    w3, b3 = lin(ks[2], d2, NUM_CLASSES)

    def bn(k, dim):
        kg, kb, km, kv = jax.random.split(k, 4)
        g = 1.0 + 0.1 * jax.random.normal(kg, (1, dim), jnp.float32)   # weight
        be = 0.1 * jax.random.normal(kb, (1, dim), jnp.float32)        # bias
        m = 0.05 * jax.random.normal(km, (1, dim), jnp.float32)        # running_mean
        v = 1.0 + 0.1 * jax.random.uniform(kv, (1, dim), jnp.float32)  # running_var > 0
        return g, be, m, v

    g1, be1, m1, v1 = bn(ks[3], d1)
    g2, be2, m2, v2 = bn(ks[4], d2)

    return dict(w1=w1, b1=b1, g1=g1, be1=be1, m1=m1, v1=v1,
                w2=w2, b2=b2, g2=g2, be2=be2, m2=m2, v2=v2,
                w3=w3, b3=b3)


def _reference_forward(x, params):
    """Float64 numpy reference mirroring the torch eval-mode forward (un-folded BN)."""
    x = np.asarray(x, np.float64)
    p = {k: np.asarray(v, np.float64) for k, v in params.items()}
    h = np.maximum(x @ p["w1"] + p["b1"], 0.0)
    h = (h - p["m1"]) / np.sqrt(p["v1"] + BN_EPS) * p["g1"] + p["be1"]
    h = np.maximum(h @ p["w2"] + p["b2"], 0.0)
    h = (h - p["m2"]) / np.sqrt(p["v2"] + BN_EPS) * p["g2"] + p["be2"]
    logits = h @ p["w3"] + p["b3"]
    z = np.exp(logits - logits.max(axis=1, keepdims=True))
    return z / z.sum(axis=1, keepdims=True)


if __name__ == "__main__":
    key = jax.random.PRNGKey(0)
    kx, kp = jax.random.split(key)

    params = init_params(kp)
    fp = fold_params(params)

    # Small demo batch (single full-array block).
    B = 64
    x = jax.random.normal(kx, (B, INPUT_DIM), jnp.float32)
    probs = jax.block_until_ready(personalized_behavior_classifier(x, fp))
    ref = _reference_forward(x, params)
    assert probs.shape == (B, NUM_CLASSES)
    np.testing.assert_allclose(np.asarray(probs), ref, rtol=5e-5, atol=5e-5)
    np.testing.assert_allclose(np.asarray(probs).sum(axis=1), np.ones(B), rtol=1e-6, atol=1e-6)

    # Larger batch exercising the pipelined multi-step grid, the masked partial last
    # block, and a batch size that is not a multiple of the 8-way packing.
    B2 = 2 * PACK * MAX_ROW_TILE + 301           # 65837 rows -> 3 grid steps, ragged tail
    x2 = jax.random.normal(jax.random.PRNGKey(1), (B2, INPUT_DIM), jnp.float32)
    probs2 = jax.block_until_ready(personalized_behavior_classifier(x2, fp))
    ref2 = _reference_forward(x2, params)
    assert probs2.shape == (B2, NUM_CLASSES)
    np.testing.assert_allclose(np.asarray(probs2), ref2, rtol=5e-5, atol=5e-5)

    print("KERNEL_OK")
</pallas_src>

<mosaic_0001>
module attributes {stable_mosaic.version = 11 : i64} {
  func.func @_mlp_softmax_kernel(%arg0: i32, %arg1: memref<8x48xf32, #tpu.memory_space<vmem>>, %arg2: memref<48x128xf32, #tpu.memory_space<vmem>>, %arg3: memref<1x128xf32, #tpu.memory_space<vmem>>, %arg4: memref<128x64xf32, #tpu.memory_space<vmem>>, %arg5: memref<1x64xf32, #tpu.memory_space<vmem>>, %arg6: memref<64x16xf32, #tpu.memory_space<vmem>>, %arg7: memref<1x16xf32, #tpu.memory_space<vmem>>, %arg8: memref<8x16xf32, #tpu.memory_space<vmem>>) attributes {dimension_semantics = [#tpu.dimension_semantics<parallel>], iteration_bounds = array<i64: 1>, scalar_prefetch = 0 : i64, scratch_operands = 0 : i64, tpu.core_type = #tpu.core_type<tc>, window_params = [{transform_indices = @transform_0, window_bounds = array<i64: 8, 48>}, {pipeline_mode = #tpu.pipeline_mode<synchronous>, transform_indices = @transform_1, window_bounds = array<i64: 48, 128>}, {pipeline_mode = #tpu.pipeline_mode<synchronous>, transform_indices = @transform_2, window_bounds = array<i64: 1, 128>}, {pipeline_mode = #tpu.pipeline_mode<synchronous>, transform_indices = @transform_3, window_bounds = array<i64: 128, 64>}, {pipeline_mode = #tpu.pipeline_mode<synchronous>, transform_indices = @transform_4, window_bounds = array<i64: 1, 64>}, {pipeline_mode = #tpu.pipeline_mode<synchronous>, transform_indices = @transform_5, window_bounds = array<i64: 64, 16>}, {pipeline_mode = #tpu.pipeline_mode<synchronous>, transform_indices = @transform_6, window_bounds = array<i64: 1, 16>}, {transform_indices = @transform_7, window_bounds = array<i64: 8, 16>}]} {
    %c0 = arith.constant 0 : index
    %c0_0 = arith.constant 0 : index
    %0 = vector.load %arg1[%c0, %c0_0] : memref<8x48xf32, #tpu.memory_space<vmem>>, vector<8x48xf32>
    %c0_1 = arith.constant 0 : index
    %c0_2 = arith.constant 0 : index
    %1 = vector.load %arg2[%c0_1, %c0_2] : memref<48x128xf32, #tpu.memory_space<vmem>>, vector<48x128xf32>
    %cst = arith.constant dense<0.000000e+00> : vector<8x128xf32>
    %2 = tpu.matmul %0, %1, %cst {dimension_numbers = #tpu.dot_dimension_numbers<[1], [0], [0], [1], [0, 0, 1, 1], [], []>, precision = #tpu.contract_precision<fp32>} : vector<8x48xf32>, vector<48x128xf32>, vector<8x128xf32> -> vector<8x128xf32>
    %c0_3 = arith.constant 0 : index
    %c0_4 = arith.constant 0 : index
    %3 = vector.load %arg3[%c0_3, %c0_4] : memref<1x128xf32, #tpu.memory_space<vmem>>, vector<1x128xf32>
    %4 = vector.broadcast %3 : vector<1x128xf32> to vector<8x128xf32>
    %5 = arith.addf %2, %4 : vector<8x128xf32>
    %cst_5 = arith.constant 0.000000e+00 : f32
    %6 = vector.broadcast %cst_5 : f32 to vector<8x128xf32>
    %7 = arith.maximumf %5, %6 : vector<8x128xf32>
    %c0_6 = arith.constant 0 : index
    %c0_7 = arith.constant 0 : index
    %8 = vector.load %arg4[%c0_6, %c0_7] : memref<128x64xf32, #tpu.memory_space<vmem>>, vector<128x64xf32>
    %cst_8 = arith.constant dense<0.000000e+00> : vector<8x64xf32>
    %9 = tpu.matmul %7, %8, %cst_8 {dimension_numbers = #tpu.dot_dimension_numbers<[1], [0], [0], [1], [0, 0, 1, 1], [], []>, precision = #tpu.contract_precision<fp32>} : vector<8x128xf32>, vector<128x64xf32>, vector<8x64xf32> -> vector<8x64xf32>
    %c0_9 = arith.constant 0 : index
    %c0_10 = arith.constant 0 : index
    %10 = vector.load %arg5[%c0_9, %c0_10] : memref<1x64xf32, #tpu.memory_space<vmem>>, vector<1x64xf32>
    %11 = vector.broadcast %10 : vector<1x64xf32> to vector<8x64xf32>
    %12 = arith.addf %9, %11 : vector<8x64xf32>
    %cst_11 = arith.constant 0.000000e+00 : f32
    %13 = vector.broadcast %cst_11 : f32 to vector<8x64xf32>
    %14 = arith.maximumf %12, %13 : vector<8x64xf32>
    %c0_12 = arith.constant 0 : index
    %c0_13 = arith.constant 0 : index
    %15 = vector.load %arg6[%c0_12, %c0_13] : memref<64x16xf32, #tpu.memory_space<vmem>>, vector<64x16xf32>
    %cst_14 = arith.constant dense<0.000000e+00> : vector<8x16xf32>
    %16 = tpu.matmul %14, %15, %cst_14 {dimension_numbers = #tpu.dot_dimension_numbers<[1], [0], [0], [1], [0, 0, 1, 1], [], []>, precision = #tpu.contract_precision<fp32>} : vector<8x64xf32>, vector<64x16xf32>, vector<8x16xf32> -> vector<8x16xf32>
    %c0_15 = arith.constant 0 : index
    %c0_16 = arith.constant 0 : index
    %17 = vector.load %arg7[%c0_15, %c0_16] : memref<1x16xf32, #tpu.memory_space<vmem>>, vector<1x16xf32>
    %18 = vector.broadcast %17 : vector<1x16xf32> to vector<8x16xf32>
    %19 = arith.addf %16, %18 : vector<8x16xf32>
    %cst_17 = arith.constant 0.000000e+00 : f32
    %20 = vector.broadcast %cst_17 : f32 to vector<8x16xf32>
    %21 = arith.subf %20, %19 : vector<8x16xf32>
    %22 = math.exp %21 : vector<8x16xf32>
    %cst_18 = arith.constant 1.000000e+00 : f32
    %23 = vector.broadcast %cst_18 : f32 to vector<8x16xf32>
    %24 = arith.addf %23, %22 : vector<8x16xf32>
    %cst_19 = arith.constant 1.000000e+00 : f32
    %25 = vector.broadcast %cst_19 : f32 to vector<8x16xf32>
    %26 = arith.divf %25, %24 : vector<8x16xf32>
    %c0_20 = arith.constant 0 : index
    %c0_21 = arith.constant 0 : index
    %27 = vector.load %arg8[%c0_20, %c0_21] : memref<8x16xf32, #tpu.memory_space<vmem>>, vector<8x16xf32>
    tpu.vector_store %arg8[%c0_20, %c0_21], %26 {strides = array<i32>} : memref<8x16xf32, #tpu.memory_space<vmem>>, vector<8x16xf32>,
    return
  }
  func.func @transform_0(%arg0: i32) -> (i32, i32) {
    %c0_i32 = arith.constant 0 : i32
    %c0_i32_0 = arith.constant 0 : i32
    return %arg0, %c0_i32 : i32, i32
  }
  func.func @transform_1(%arg0: i32) -> (i32, i32) {
    %c0_i32 = arith.constant 0 : i32
    %c0_i32_0 = arith.constant 0 : i32
    %c0_i32_1 = arith.constant 0 : i32
    return %c0_i32, %c0_i32_0 : i32, i32
  }
  func.func @transform_2(%arg0: i32) -> (i32, i32) {
    %c0_i32 = arith.constant 0 : i32
    %c0_i32_0 = arith.constant 0 : i32
    %c0_i32_1 = arith.constant 0 : i32
    return %c0_i32, %c0_i32_0 : i32, i32
  }
  func.func @transform_3(%arg0: i32) -> (i32, i32) {
    %c0_i32 = arith.constant 0 : i32
    %c0_i32_0 = arith.constant 0 : i32
    %c0_i32_1 = arith.constant 0 : i32
    return %c0_i32, %c0_i32_0 : i32, i32
  }
  func.func @transform_4(%arg0: i32) -> (i32, i32) {
    %c0_i32 = arith.constant 0 : i32
    %c0_i32_0 = arith.constant 0 : i32
    %c0_i32_1 = arith.constant 0 : i32
    return %c0_i32, %c0_i32_0 : i32, i32
  }
  func.func @transform_5(%arg0: i32) -> (i32, i32) {
    %c0_i32 = arith.constant 0 : i32
    %c0_i32_0 = arith.constant 0 : i32
    %c0_i32_1 = arith.constant 0 : i32
    return %c0_i32, %c0_i32_0 : i32, i32
  }
  func.func @transform_6(%arg0: i32) -> (i32, i32) {
    %c0_i32 = arith.constant 0 : i32
    %c0_i32_0 = arith.constant 0 : i32
    %c0_i32_1 = arith.constant 0 : i32
    return %c0_i32, %c0_i32_0 : i32, i32
  }
  func.func @transform_7(%arg0: i32) -> (i32, i32) {
    %c0_i32 = arith.constant 0 : i32
    %c0_i32_0 = arith.constant 0 : i32
    return %arg0, %c0_i32 : i32, i32
  }
}

</mosaic_0001>

<llo_original>
// kernel: personalized_behavior_classifier.1
$region0: #{personalized_behavior_classifier.1}
  #allocation0 [shape = 'u32[]', space=smem, size = 0x4, offset = 0x4, fixed_abs, tag = 'smem constant byte address 0x4 - core index']
  #allocation1 [shape = 'u32[144,128]{1,0:T(1,128)}', space=vmem, size = 0x12000, scoped, tag = 'internal scratch']
  %s0 = inlined_call_operand.vmem [shape: f32[8,48], index: 0, kind: input, shape index: {}]
  %s1 = inlined_call_operand.vmem [shape: f32[48,128], index: 1, kind: input, shape index: {}]
  %s2 = inlined_call_operand.vmem [shape: f32[1,128], index: 2, kind: input, shape index: {}]
  %s3 = inlined_call_operand.vmem [shape: f32[128,64], index: 3, kind: input, shape index: {}]
  %s4 = inlined_call_operand.vmem [shape: f32[1,64], index: 4, kind: input, shape index: {}]
  %s5 = inlined_call_operand.vmem [shape: f32[64,16], index: 5, kind: input, shape index: {}]
  %s6 = inlined_call_operand.vmem [shape: f32[1,16], index: 6, kind: input, shape index: {}]
  %s7 = inlined_call_operand.vmem [shape: f32[8,16], index: 7, kind: output, shape index: {}]
  %s8 = sld [smem:[#allocation0]]
  $region38: #{personalized_behavior_classifier.1} parent=0
    _
  %s10 = ssub.s32 1, %s8
  %s11 = scalar_select 0, %s10, %s8
  // Predicated region
  $region2: #{personalized_behavior_classifier.1} parent=0 // pred_check
    _
  $region3: #{personalized_behavior_classifier.1} parent=0 // pred_check_branch
    %13 = sbr.rel (0) target = $region5
  $region4: #{personalized_behavior_classifier.1} parent=0 // pred_region
    _
  $region5: #{personalized_behavior_classifier.1} parent=0 // pred_fallthru
    _
  // Predicated region
  $region6: #{personalized_behavior_classifier.1} parent=0 // pred_check
    _
  $region7: #{personalized_behavior_classifier.1} parent=0 // pred_check_branch
    %15 = sbr.rel (0) target = $region9
  $region8: #{personalized_behavior_classifier.1} parent=0 // pred_region
    _
  $region9: #{personalized_behavior_classifier.1} parent=0 // pred_fallthru
    _
  // Predicated region
  $region10: #{personalized_behavior_classifier.1} parent=0 // pred_check
    _
  $region11: #{personalized_behavior_classifier.1} parent=0 // pred_check_branch
    %17 = sbr.rel (0) target = $region13
  $region12: #{personalized_behavior_classifier.1} parent=0 // pred_region
    _
  $region13: #{personalized_behavior_classifier.1} parent=0 // pred_fallthru
    _
  // Predicated region
  $region14: #{personalized_behavior_classifier.1} parent=0 // pred_check
    _
  $region15: #{personalized_behavior_classifier.1} parent=0 // pred_check_branch
    %19 = sbr.rel (0) target = $region17
  $region16: #{personalized_behavior_classifier.1} parent=0 // pred_region
    _
  $region17: #{personalized_behavior_classifier.1} parent=0 // pred_fallthru
    _
  // Predicated region
  $region18: #{personalized_behavior_classifier.1} parent=0 // pred_check
    _
  $region19: #{personalized_behavior_classifier.1} parent=0 // pred_check_branch
    %21 = sbr.rel (0) target = $region21
  $region20: #{personalized_behavior_classifier.1} parent=0 // pred_region
    _
  $region21: #{personalized_behavior_classifier.1} parent=0 // pred_fallthru
    _
  // Predicated region
  $region22: #{personalized_behavior_classifier.1} parent=0 // pred_check
    _
  $region23: #{personalized_behavior_classifier.1} parent=0 // pred_check_branch
    %23 = sbr.rel (0) target = $region25
  $region24: #{personalized_behavior_classifier.1} parent=0 // pred_region
    _
  $region25: #{personalized_behavior_classifier.1} parent=0 // pred_fallthru
    _
  // Predicated region
  $region26: #{personalized_behavior_classifier.1} parent=0 // pred_check
    _
  $region27: #{personalized_behavior_classifier.1} parent=0 // pred_check_branch
    %25 = sbr.rel (0) target = $region29
  $region28: #{personalized_behavior_classifier.1} parent=0 // pred_region
    _
  $region29: #{personalized_behavior_classifier.1} parent=0 // pred_fallthru
    _
  %v26 = vld [vmem:[%s0] sm:$0xff]
  %v27 = vld [vmem:[%s1] sm:$0xff]
  %v28 = vld [vmem:[%s1 + $0x8] sm:$0xff]
  %v29 = vld [vmem:[%s1 + $0x10] sm:$0xff]
  %v30 = vld [vmem:[%s1 + $0x18] sm:$0xff]
  %v31 = vld [vmem:[%s1 + $0x20] sm:$0xff]
  %v32 = vld [vmem:[%s1 + $0x28] sm:$0xff]
  %v33 = vld [vmem:[%s2] sm:$0x1]
  %v35 = vlaneseq
  %v36 = vshrl.u32 %v35, 7
  %v37 = vsub.s32 0, %v36
  %v38 = vrot.slane %v33, %v37
  %vm40 = vcmask 392192
  %v42 = vsel %vm40, %v26, 0
  %44 = vmatprep.subr.mxu0 0.0
  %v45 = vand.u32 %v27, 4294901760
  %46 = vmatpush1.msra.mxu0 %v45
  %47 = vmatprep.subr.mxu0 0.0
  %v48 = vand.u32 %v28, 4294901760
  %49 = vmatpush1.msra.mxu0 %v48
  %50 = vmatprep.subr.mxu0 0.0
  %v51 = vand.u32 %v29, 4294901760
  %52 = vmatpush1.msra.mxu0 %v51
  %53 = vmatprep.subr.mxu0 0.0
  %v54 = vand.u32 %v30, 4294901760
  %55 = vmatpush1.msra.mxu0 %v54
  %56 = vmatprep.subr.mxu0 0.0
  %v57 = vand.u32 %v31, 4294901760
  %58 = vmatpush1.msra.mxu0 %v57
  %59 = vmatprep.subr.mxu0 0.0
  %v60 = vand.u32 %v32, 4294901760
  %61 = vmatpush1.msra.mxu0 %v60
  %62 = vmatprep.subr.mxu0 0.0
  %63 = vmatpush1.msra.mxu0 0.0
  %64 = vmatprep.subr.mxu0 0.0
  %65 = vmatpush1.msra.mxu0 0.0
  %66 = vmatprep.subr.mxu0 0.0
  %67 = vmatpush1.msra.mxu0 0.0
  %68 = vmatprep.subr.mxu0 0.0
  %69 = vmatpush1.msra.mxu0 0.0
  %70 = vmatprep.subr.mxu0 0.0
  %71 = vmatpush1.msra.mxu0 0.0
  %72 = vmatprep.subr.mxu0 0.0
  %73 = vmatpush1.msra.mxu0 0.0
  %74 = vmatprep.subr.mxu0 0.0
  %75 = vmatpush1.msra.mxu0 0.0
  %76 = vmatprep.subr.mxu0 0.0
  %77 = vmatpush1.msra.mxu0 0.0
  %78 = vmatprep.subr.mxu0 0.0
  %79 = vmatpush1.msra.mxu0 0.0
  %80 = vmatprep.subr.mxu0 0.0
  %81 = vmatpush1.msra.mxu0 0.0
  %82 = vmatprep.subr.mxu0 0.0
  %83 = vmatpush1.msra.mxu0 0.0
  %84 = vmatprep.subr.mxu0 0.0
  %85 = vmatpush1.msra.mxu0 0.0
  %86 = vmatprep.subr.mxu0 0.0
  %87 = vmatpush1.msra.mxu0 0.0
  %88 = vmatprep.subr.mxu0 0.0
  %89 = vmatpush1.msra.mxu0 0.0
  %90 = vmatprep.subr.mxu0 0.0
  %91 = vmatpush1.msra.mxu0 0.0
  %92 = vmatprep.subr.mxu0 0.0
  %93 = vmatpush1.msra.mxu0 0.0
  %94 = vmatprep.subr.mxu0 0.0
  %95 = vmatpush1.msra.mxu0 0.0
  %96 = vmatprep.subr.mxu0 0.0
  %97 = vmatpush1.msra.mxu0 0.0
  %98 = vmatprep.subr.mxu0 0.0
  %99 = vmatpush1.msra.mxu0 0.0
  %100 = vmatprep.subr.mxu0 0.0
  %101 = vmatpush1.msra.mxu0 0.0
  %102 = vmatprep.subr.mxu0 0.0
  %103 = vmatpush1.msra.mxu0 0.0
  %104 = vmatprep.subr.mxu0 0.0
  %105 = vmatpush1.msra.mxu0 0.0
  %106 = vmatprep.subr.mxu0 0.0
  %107 = vmatpush1.msra.mxu0 0.0
  %108 = vmatprep.subr.mxu0 0.0
  %109 = vmatpush1.msra.mxu0 0.0
  %110 = vmatprep.subr.mxu0 0.0
  %111 = vmatpush1.msra.mxu0 0.0
  %112 = vmatprep.subr.mxu0 0.0
  %113 = vmatpush1.msra.mxu0 0.0
  %114 = vmatprep.mubr.f32.mxu0 0.0
  %v115 = vand.u32 %v42, 4294901760
  %v116 = vsub.f32 %v42, %v115
  %v117 = vand.u32 %v116, 4294901760
  %v118 = vsub.f32 %v116, %v117
  %v119 = vand.u32 %v118, 4294901760
  %120 = vmatmul.mubr.f32.gmra.mrb[0].mxu0 %v119
  %v121 = vpop.f32.mrb[0].mxu0
  %v122 = vadd.f32 %v38, %v121
  %v123 = vpop.f32.mrb[0].mxu0
  %124 = vdwg.mxu0
  %125 = vmatprep.subr.mxu0 0.0
  %v126 = vand.u32 %v27, 4294901760
  %v127 = vsub.f32 %v27, %v126
  %v128 = vand.u32 %v127, 4294901760
  %v129 = vsub.f32 %v127, %v128
  %v130 = vand.u32 %v129, 4294901760
  %131 = vmatpush1.msra.mxu0 %v130
  %132 = vmatprep.subr.mxu0 0.0
  %v133 = vand.u32 %v28, 4294901760
  %v134 = vsub.f32 %v28, %v133
  %v135 = vand.u32 %v134, 4294901760
  %v136 = vsub.f32 %v134, %v135
  %v137 = vand.u32 %v136, 4294901760
  %138 = vmatpush1.msra.mxu0 %v137
  %139 = vmatprep.subr.mxu0 0.0
  %v140 = vand.u32 %v29, 4294901760
  %v141 = vsub.f32 %v29, %v140
  %v142 = vand.u32 %v141, 4294901760
  %v143 = vsub.f32 %v141, %v142
  %v144 = vand.u32 %v143, 4294901760
  %145 = vmatpush1.msra.mxu0 %v144
  %146 = vmatprep.subr.mxu0 0.0
  %v147 = vand.u32 %v30, 4294901760
  %v148 = vsub.f32 %v30, %v147
  %v149 = vand.u32 %v148, 4294901760
  %v150 = vsub.f32 %v148, %v149
  %v151 = vand.u32 %v150, 4294901760
  %152 = vmatpush1.msra.mxu0 %v151
  %153 = vmatprep.subr.mxu0 0.0
  %v154 = vand.u32 %v31, 4294901760
  %v155 = vsub.f32 %v31, %v154
  %v156 = vand.u32 %v155, 4294901760
  %v157 = vsub.f32 %v155, %v156
  %v158 = vand.u32 %v157, 4294901760
  %159 = vmatpush1.msra.mxu0 %v158
  %160 = vmatprep.subr.mxu0 0.0
  %v161 = vand.u32 %v32, 4294901760
  %v162 = vsub.f32 %v32, %v161
  %v163 = vand.u32 %v162, 4294901760
  %v164 = vsub.f32 %v162, %v163
  %v165 = vand.u32 %v164, 4294901760
  %166 = vmatpush1.msra.mxu0 %v165
  %167 = vmatprep.subr.mxu0 0.0
  %168 = vmatpush1.msra.mxu0 0.0
  %169 = vmatprep.subr.mxu0 0.0
  %170 = vmatpush1.msra.mxu0 0.0
  %171 = vmatprep.subr.mxu0 0.0
  %172 = vmatpush1.msra.mxu0 0.0
  %173 = vmatprep.subr.mxu0 0.0
  %174 = vmatpush1.msra.mxu0 0.0
  %175 = vmatprep.subr.mxu0 0.0
  %176 = vmatpush1.msra.mxu0 0.0
  %177 = vmatprep.subr.mxu0 0.0
  %178 = vmatpush1.msra.mxu0 0.0
  %179 = vmatprep.subr.mxu0 0.0
  %180 = vmatpush1.msra.mxu0 0.0
  %181 = vmatprep.subr.mxu0 0.0
  %182 = vmatpush1.msra.mxu0 0.0
  %183 = vmatprep.subr.mxu0 0.0
  %184 = vmatpush1.msra.mxu0 0.0
  %185 = vmatprep.subr.mxu0 0.0
  %186 = vmatpush1.msra.mxu0 0.0
  %187 = vmatprep.subr.mxu0 0.0
  %188 = vmatpush1.msra.mxu0 0.0
  %189 = vmatprep.subr.mxu0 0.0
  %190 = vmatpush1.msra.mxu0 0.0
  %191 = vmatprep.subr.mxu0 0.0
  %192 = vmatpush1.msra.mxu0 0.0
  %193 = vmatprep.subr.mxu0 0.0
  %194 = vmatpush1.msra.mxu0 0.0
  %195 = vmatprep.subr.mxu0 0.0
  %196 = vmatpush1.msra.mxu0 0.0
  %197 = vmatprep.subr.mxu0 0.0
  %198 = vmatpush1.msra.mxu0 0.0
  %199 = vmatprep.subr.mxu0 0.0
  %200 = vmatpush1.msra.mxu0 0.0
  %201 = vmatprep.subr.mxu0 0.0
  %202 = vmatpush1.msra.mxu0 0.0
  %203 = vmatprep.subr.mxu0 0.0
  %204 = vmatpush1.msra.mxu0 0.0
  %205 = vmatprep.subr.mxu0 0.0
  %206 = vmatpush1.msra.mxu0 0.0
  %207 = vmatprep.subr.mxu0 0.0
  %208 = vmatpush1.msra.mxu0 0.0
  %209 = vmatprep.subr.mxu0 0.0
  %210 = vmatpush1.msra.mxu0 0.0
  %211 = vmatprep.subr.mxu0 0.0
  %212 = vmatpush1.msra.mxu0 0.0
  %213 = vmatprep.subr.mxu0 0.0
  %214 = vmatpush1.msra.mxu0 0.0
  %215 = vmatprep.subr.mxu0 0.0
  %216 = vmatpush1.msra.mxu0 0.0
  %217 = vmatprep.subr.mxu0 0.0
  %218 = vmatpush1.msra.mxu0 0.0
  %219 = vmatprep.mubr.f32.mxu0 0.0
  %v220 = vand.u32 %v42, 4294901760
  %221 = vmatmul.mubr.f32.gmra.mrb[0].mxu0 %v220
  %v222 = vpop.f32.mrb[0].mxu0
  %v223 = vadd.f32 %v122, %v222
  %v224 = vpop.f32.mrb[0].mxu0
  %225 = vdwg.mxu0
  %226 = vmatprep.subr.mxu0 0.0
  %v227 = vand.u32 %v27, 4294901760
  %v228 = vsub.f32 %v27, %v227
  %229 = vmatpush1.msra.mxu0 %v228
  %230 = vmatprep.subr.mxu0 0.0
  %v231 = vand.u32 %v28, 4294901760
  %v232 = vsub.f32 %v28, %v231
  %233 = vmatpush1.msra.mxu0 %v232
  %234 = vmatprep.subr.mxu0 0.0
  %v235 = vand.u32 %v29, 4294901760
  %v236 = vsub.f32 %v29, %v235
  %237 = vmatpush1.msra.mxu0 %v236
  %238 = vmatprep.subr.mxu0 0.0
  %v239 = vand.u32 %v30, 4294901760
  %v240 = vsub.f32 %v30, %v239
  %241 = vmatpush1.msra.mxu0 %v240
  %242 = vmatprep.subr.mxu0 0.0
  %v243 = vand.u32 %v31, 4294901760
  %v244 = vsub.f32 %v31, %v243
  %245 = vmatpush1.msra.mxu0 %v244
  %246 = vmatprep.subr.mxu0 0.0
  %v247 = vand.u32 %v32, 4294901760
  %v248 = vsub.f32 %v32, %v247
  %249 = vmatpush1.msra.mxu0 %v248
  %250 = vmatprep.subr.mxu0 0.0
  %251 = vmatpush1.msra.mxu0 0.0
  %252 = vmatprep.subr.mxu0 0.0
  %253 = vmatpush1.msra.mxu0 0.0
  %254 = vmatprep.subr.mxu0 0.0
  %255 = vmatpush1.msra.mxu0 0.0
  %256 = vmatprep.subr.mxu0 0.0
  %257 = vmatpush1.msra.mxu0 0.0
  %258 = vmatprep.subr.mxu0 0.0
  %259 = vmatpush1.msra.mxu0 0.0
  %260 = vmatprep.subr.mxu0 0.0
  %261 = vmatpush1.msra.mxu0 0.0
  %262 = vmatprep.subr.mxu0 0.0
  %263 = vmatpush1.msra.mxu0 0.0
  %264 = vmatprep.subr.mxu0 0.0
  %265 = vmatpush1.msra.mxu0 0.0
  %266 = vmatprep.subr.mxu0 0.0
  %267 = vmatpush1.msra.mxu0 0.0
  %268 = vmatprep.subr.mxu0 0.0
  %269 = vmatpush1.msra.mxu0 0.0
  %270 = vmatprep.subr.mxu0 0.0
  %271 = vmatpush1.msra.mxu0 0.0
  %272 = vmatprep.subr.mxu0 0.0
  %273 = vmatpush1.msra.mxu0 0.0
  %274 = vmatprep.subr.mxu0 0.0
  %275 = vmatpush1.msra.mxu0 0.0
  %276 = vmatprep.subr.mxu0 0.0
  %277 = vmatpush1.msra.mxu0 0.0
  %278 = vmatprep.subr.mxu0 0.0
  %279 = vmatpush1.msra.mxu0 0.0
  %280 = vmatprep.subr.mxu0 0.0
  %281 = vmatpush1.msra.mxu0 0.0
  %282 = vmatprep.subr.mxu0 0.0
  %283 = vmatpush1.msra.mxu0 0.0
  %284 = vmatprep.subr.mxu0 0.0
  %285 = vmatpush1.msra.mxu0 0.0
  %286 = vmatprep.subr.mxu0 0.0
  %287 = vmatpush1.msra.mxu0 0.0
  %288 = vmatprep.subr.mxu0 0.0
  %289 = vmatpush1.msra.mxu0 0.0
  %290 = vmatprep.subr.mxu0 0.0
  %291 = vmatpush1.msra.mxu0 0.0
  %292 = vmatprep.subr.mxu0 0.0
  %293 = vmatpush1.msra.mxu0 0.0
  %294 = vmatprep.subr.mxu0 0.0
  %295 = vmatpush1.msra.mxu0 0.0
  %296 = vmatprep.subr.mxu0 0.0
  %297 = vmatpush1.msra.mxu0 0.0
  %298 = vmatprep.subr.mxu0 0.0
  %299 = vmatpush1.msra.mxu0 0.0
  %300 = vmatprep.subr.mxu0 0.0
  %301 = vmatpush1.msra.mxu0 0.0
  %302 = vmatprep.mubr.f32.mxu0 0.0
  %v303 = vand.u32 %v42, 4294901760
  %v304 = vsub.f32 %v42, %v303
  %305 = vmatmul.mubr.f32.gmra.mrb[0].mxu0 %v304
  %v306 = vpop.f32.mrb[0].mxu0
  %v307 = vadd.f32 %v223, %v306
  %v308 = vpop.f32.mrb[0].mxu0
  %309 = vdwg.mxu0
  %310 = vmatprep.subr.mxu0 0.0
  %v311 = vand.u32 %v27, 4294901760
  %312 = vmatpush1.msra.mxu0 %v311
  %313 = vmatprep.subr.mxu0 0.0
  %v314 = vand.u32 %v28, 4294901760
  %315 = vmatpush1.msra.mxu0 %v314
  %316 = vmatprep.subr.mxu0 0.0
  %v317 = vand.u32 %v29, 4294901760
  %318 = vmatpush1.msra.mxu0 %v317
  %319 = vmatprep.subr.mxu0 0.0
  %v320 = vand.u32 %v30, 4294901760
  %321 = vmatpush1.msra.mxu0 %v320
  %322 = vmatprep.subr.mxu0 0.0
  %v323 = vand.u32 %v31, 4294901760
  %324 = vmatpush1.msra.mxu0 %v323
  %325 = vmatprep.subr.mxu0 0.0
  %v326 = vand.u32 %v32, 4294901760
  %327 = vmatpush1.msra.mxu0 %v326
  %328 = vmatprep.subr.mxu0 0.0
  %329 = vmatpush1.msra.mxu0 0.0
  %330 = vmatprep.subr.mxu0 0.0
  %331 = vmatpush1.msra.mxu0 0.0
  %332 = vmatprep.subr.mxu0 0.0
  %333 = vmatpush1.msra.mxu0 0.0
  %334 = vmatprep.subr.mxu0 0.0
  %335 = vmatpush1.msra.mxu0 0.0
  %336 = vmatprep.subr.mxu0 0.0
  %337 = vmatpush1.msra.mxu0 0.0
  %338 = vmatprep.subr.mxu0 0.0
  %339 = vmatpush1.msra.mxu0 0.0
  %340 = vmatprep.subr.mxu0 0.0
  %341 = vmatpush1.msra.mxu0 0.0
  %342 = vmatprep.subr.mxu0 0.0
  %343 = vmatpush1.msra.mxu0 0.0
  %344 = vmatprep.subr.mxu0 0.0
  %345 = vmatpush1.msra.mxu0 0.0
  %346 = vmatprep.subr.mxu0 0.0
  %347 = vmatpush1.msra.mxu0 0.0
  %348 = vmatprep.subr.mxu0 0.0
  %349 = vmatpush1.msra.mxu0 0.0
  %350 = vmatprep.subr.mxu0 0.0
  %351 = vmatpush1.msra.mxu0 0.0
  %352 = vmatprep.subr.mxu0 0.0
  %353 = vmatpush1.msra.mxu0 0.0
  %354 = vmatprep.subr.mxu0 0.0
  %355 = vmatpush1.msra.mxu0 0.0
  %356 = vmatprep.subr.mxu0 0.0
  %357 = vmatpush1.msra.mxu0 0.0
  %358 = vmatprep.subr.mxu0 0.0
  %359 = vmatpush1.msra.mxu0 0.0
  %360 = vmatprep.subr.mxu0 0.0
  %361 = vmatpush1.msra.mxu0 0.0
  %362 = vmatprep.subr.mxu0 0.0
  %363 = vmatpush1.msra.mxu0 0.0
  %364 = vmatprep.subr.mxu0 0.0
  %365 = vmatpush1.msra.mxu0 0.0
  %366 = vmatprep.subr.mxu0 0.0
  %367 = vmatpush1.msra.mxu0 0.0
  %368 = vmatprep.subr.mxu0 0.0
  %369 = vmatpush1.msra.mxu0 0.0
  %370 = vmatprep.subr.mxu0 0.0
  %371 = vmatpush1.msra.mxu0 0.0
  %372 = vmatprep.subr.mxu0 0.0
  %373 = vmatpush1.msra.mxu0 0.0
  %374 = vmatprep.subr.mxu0 0.0
  %375 = vmatpush1.msra.mxu0 0.0
  %376 = vmatprep.subr.mxu0 0.0
  %377 = vmatpush1.msra.mxu0 0.0
  %378 = vmatprep.subr.mxu0 0.0
  %379 = vmatpush1.msra.mxu0 0.0
  %380 = vmatprep.mubr.f32.mxu0 0.0
  %v381 = vand.u32 %v42, 4294901760
  %v382 = vsub.f32 %v42, %v381
  %v383 = vand.u32 %v382, 4294901760
  %384 = vmatmul.mubr.f32.gmra.mrb[0].mxu0 %v383
  %v385 = vpop.f32.mrb[0].mxu0
  %v386 = vadd.f32 %v307, %v385
  %v387 = vpop.f32.mrb[0].mxu0
  %388 = vdwg.mxu0
  %389 = vmatprep.subr.mxu0 0.0
  %v390 = vand.u32 %v27, 4294901760
  %v391 = vsub.f32 %v27, %v390
  %v392 = vand.u32 %v391, 4294901760
  %393 = vmatpush1.msra.mxu0 %v392
  %394 = vmatprep.subr.mxu0 0.0
  %v395 = vand.u32 %v28, 4294901760
  %v396 = vsub.f32 %v28, %v395
  %v397 = vand.u32 %v396, 4294901760
  %398 = vmatpush1.msra.mxu0 %v397
  %399 = vmatprep.subr.mxu0 0.0
  %v400 = vand.u32 %v29, 4294901760
  %v401 = vsub.f32 %v29, %v400
  %v402 = vand.u32 %v401, 4294901760
  %403 = vmatpush1.msra.mxu0 %v402
  %404 = vmatprep.subr.mxu0 0.0
  %v405 = vand.u32 %v30, 4294901760
  %v406 = vsub.f32 %v30, %v405
  %v407 = vand.u32 %v406, 4294901760
  %408 = vmatpush1.msra.mxu0 %v407
  %409 = vmatprep.subr.mxu0 0.0
  %v410 = vand.u32 %v31, 4294901760
  %v411 = vsub.f32 %v31, %v410
  %v412 = vand.u32 %v411, 4294901760
  %413 = vmatpush1.msra.mxu0 %v412
  %414 = vmatprep.subr.mxu0 0.0
  %v415 = vand.u32 %v32, 4294901760
  %v416 = vsub.f32 %v32, %v415
  %v417 = vand.u32 %v416, 4294901760
  %418 = vmatpush1.msra.mxu0 %v417
  %419 = vmatprep.subr.mxu0 0.0
  %420 = vmatpush1.msra.mxu0 0.0
  %421 = vmatprep.subr.mxu0 0.0
  %422 = vmatpush1.msra.mxu0 0.0
  %423 = vmatprep.subr.mxu0 0.0
  %424 = vmatpush1.msra.mxu0 0.0
  %425 = vmatprep.subr.mxu0 0.0
  %426 = vmatpush1.msra.mxu0 0.0
  %427 = vmatprep.subr.mxu0 0.0
  %428 = vmatpush1.msra.mxu0 0.0
  %429 = vmatprep.subr.mxu0 0.0
  %430 = vmatpush1.msra.mxu0 0.0
  %431 = vmatprep.subr.mxu0 0.0
  %432 = vmatpush1.msra.mxu0 0.0
  %433 = vmatprep.subr.mxu0 0.0
  %434 = vmatpush1.msra.mxu0 0.0
  %435 = vmatprep.subr.mxu0 0.0
  %436 = vmatpush1.msra.mxu0 0.0
  %437 = vmatprep.subr.mxu0 0.0
  %438 = vmatpush1.msra.mxu0 0.0
  %439 = vmatprep.subr.mxu0 0.0
  %440 = vmatpush1.msra.mxu0 0.0
  %441 = vmatprep.subr.mxu0 0.0
  %442 = vmatpush1.msra.mxu0 0.0
  %443 = vmatprep.subr.mxu0 0.0
  %444 = vmatpush1.msra.mxu0 0.0
  %445 = vmatprep.subr.mxu0 0.0
  %446 = vmatpush1.msra.mxu0 0.0
  %447 = vmatprep.subr.mxu0 0.0
  %448 = vmatpush1.msra.mxu0 0.0
  %449 = vmatprep.subr.mxu0 0.0
  %450 = vmatpush1.msra.mxu0 0.0
  %451 = vmatprep.subr.mxu0 0.0
  %452 = vmatpush1.msra.mxu0 0.0
  %453 = vmatprep.subr.mxu0 0.0
  %454 = vmatpush1.msra.mxu0 0.0
  %455 = vmatprep.subr.mxu0 0.0
  %456 = vmatpush1.msra.mxu0 0.0
  %457 = vmatprep.subr.mxu0 0.0
  %458 = vmatpush1.msra.mxu0 0.0
  %459 = vmatprep.subr.mxu0 0.0
  %460 = vmatpush1.msra.mxu0 0.0
  %461 = vmatprep.subr.mxu0 0.0
  %462 = vmatpush1.msra.mxu0 0.0
  %463 = vmatprep.subr.mxu0 0.0
  %464 = vmatpush1.msra.mxu0 0.0
  %465 = vmatprep.subr.mxu0 0.0
  %466 = vmatpush1.msra.mxu0 0.0
  %467 = vmatprep.subr.mxu0 0.0
  %468 = vmatpush1.msra.mxu0 0.0
  %469 = vmatprep.subr.mxu0 0.0
  %470 = vmatpush1.msra.mxu0 0.0
  %471 = vmatprep.mubr.f32.mxu0 0.0
  %v472 = vand.u32 %v42, 4294901760
  %473 = vmatmul.mubr.f32.gmra.mrb[0].mxu0 %v472
  %v474 = vpop.f32.mrb[0].mxu0
  %v475 = vadd.f32 %v386, %v474
  %v476 = vpop.f32.mrb[0].mxu0
  %477 = vdwg.mxu0
  %478 = vmatprep.subr.mxu0 0.0
  %v479 = vand.u32 %v27, 4294901760
  %480 = vmatpush1.msra.mxu0 %v479
  %481 = vmatprep.subr.mxu0 0.0
  %v482 = vand.u32 %v28, 4294901760
  %483 = vmatpush1.msra.mxu0 %v482
  %484 = vmatprep.subr.mxu0 0.0
  %v485 = vand.u32 %v29, 4294901760
  %486 = vmatpush1.msra.mxu0 %v485
  %487 = vmatprep.subr.mxu0 0.0
  %v488 = vand.u32 %v30, 4294901760
  %489 = vmatpush1.msra.mxu0 %v488
  %490 = vmatprep.subr.mxu0 0.0
  %v491 = vand.u32 %v31, 4294901760
  %492 = vmatpush1.msra.mxu0 %v491
  %493 = vmatprep.subr.mxu0 0.0
  %v494 = vand.u32 %v32, 4294901760
  %495 = vmatpush1.msra.mxu0 %v494
  %496 = vmatprep.subr.mxu0 0.0
  %497 = vmatpush1.msra.mxu0 0.0
  %498 = vmatprep.subr.mxu0 0.0
  %499 = vmatpush1.msra.mxu0 0.0
  %500 = vmatprep.subr.mxu0 0.0
  %501 = vmatpush1.msra.mxu0 0.0
  %502 = vmatprep.subr.mxu0 0.0
  %503 = vmatpush1.msra.mxu0 0.0
  %504 = vmatprep.subr.mxu0 0.0
  %505 = vmatpush1.msra.mxu0 0.0
  %506 = vmatprep.subr.mxu0 0.0
  %507 = vmatpush1.msra.mxu0 0.0
  %508 = vmatprep.subr.mxu0 0.0
  %509 = vmatpush1.msra.mxu0 0.0
  %510 = vmatprep.subr.mxu0 0.0
  %511 = vmatpush1.msra.mxu0 0.0
  %512 = vmatprep.subr.mxu0 0.0
  %513 = vmatpush1.msra.mxu0 0.0
  %514 = vmatprep.subr.mxu0 0.0
  %515 = vmatpush1.msra.mxu0 0.0
  %516 = vmatprep.subr.mxu0 0.0
  %517 = vmatpush1.msra.mxu0 0.0
  %518 = vmatprep.subr.mxu0 0.0
  %519 = vmatpush1.msra.mxu0 0.0
  %520 = vmatprep.subr.mxu0 0.0
  %521 = vmatpush1.msra.mxu0 0.0
  %522 = vmatprep.subr.mxu0 0.0
  %523 = vmatpush1.msra.mxu0 0.0
  %524 = vmatprep.subr.mxu0 0.0
  %525 = vmatpush1.msra.mxu0 0.0
  %526 = vmatprep.subr.mxu0 0.0
  %527 = vmatpush1.msra.mxu0 0.0
  %528 = vmatprep.subr.mxu0 0.0
  %529 = vmatpush1.msra.mxu0 0.0
  %530 = vmatprep.subr.mxu0 0.0
  %531 = vmatpush1.msra.mxu0 0.0
  %532 = vmatprep.subr.mxu0 0.0
  %533 = vmatpush1.msra.mxu0 0.0
  %534 = vmatprep.subr.mxu0 0.0
  %535 = vmatpush1.msra.mxu0 0.0
  %536 = vmatprep.subr.mxu0 0.0
  %537 = vmatpush1.msra.mxu0 0.0
  %538 = vmatprep.subr.mxu0 0.0
  %539 = vmatpush1.msra.mxu0 0.0
  %540 = vmatprep.subr.mxu0 0.0
  %541 = vmatpush1.msra.mxu0 0.0
  %542 = vmatprep.subr.mxu0 0.0
  %543 = vmatpush1.msra.mxu0 0.0
  %544 = vmatprep.subr.mxu0 0.0
  %545 = vmatpush1.msra.mxu0 0.0
  %546 = vmatprep.subr.mxu0 0.0
  %547 = vmatpush1.msra.mxu0 0.0
  %548 = vmatprep.mubr.f32.mxu0 0.0
  %v549 = vand.u32 %v42, 4294901760
  %550 = vmatmul.mubr.f32.gmra.mrb[0].mxu0 %v549
  %v551 = vpop.f32.mrb[0].mxu0
  %v552 = vadd.f32 %v475, %v551
  %v553 = vpop.f32.mrb[0].mxu0
  %554 = vdwg.mxu0
  %v555 = vmax.f32 %v552, 0.0
  %v556 = vld [vmem:[%s3] sm:$0xff]
  %v557 = vld [vmem:[%s3 + $0x8] sm:$0xff]
  %v558 = vld [vmem:[%s3 + $0x10] sm:$0xff]
  %v559 = vld [vmem:[%s3 + $0x18] sm:$0xff]
  %v560 = vld [vmem:[%s3 + $0x20] sm:$0xff]
  %v561 = vld [vmem:[%s3 + $0x28] sm:$0xff]
  %v562 = vld [vmem:[%s3 + $0x30] sm:$0xff]
  %v563 = vld [vmem:[%s3 + $0x38] sm:$0xff]
  %v564 = vld [vmem:[%s3 + $0x40] sm:$0xff]
  %v565 = vld [vmem:[%s3 + $0x48] sm:$0xff]
  %v566 = vld [vmem:[%s3 + $0x50] sm:$0xff]
  %v567 = vld [vmem:[%s3 + $0x58] sm:$0xff]
  %v568 = vld [vmem:[%s3 + $0x60] sm:$0xff]
  %v569 = vld [vmem:[%s3 + $0x68] sm:$0xff]
  %v570 = vld [vmem:[%s3 + $0x70] sm:$0xff]
  %v571 = vld [vmem:[%s3 + $0x78] sm:$0xff]
  %v572 = vld [vmem:[%s4] sm:$0x1]
  %v574 = vlaneseq
  %v575 = vshrl.u32 %v574, 7
  %v576 = vsub.s32 0, %v575
  %v577 = vrot.slane %v572, %v576
  %579 = vmatprep.subr.mxu0 0.0
  %v580 = vand.u32 %v556, 4294901760
  %581 = vmatpush1.msra.mxu0 %v580
  %582 = vmatprep.subr.mxu0 0.0
  %v583 = vand.u32 %v557, 4294901760
  %584 = vmatpush1.msra.mxu0 %v583
  %585 = vmatprep.subr.mxu0 0.0
  %v586 = vand.u32 %v558, 4294901760
  %587 = vmatpush1.msra.mxu0 %v586
  %588 = vmatprep.subr.mxu0 0.0
  %v589 = vand.u32 %v559, 4294901760
  %590 = vmatpush1.msra.mxu0 %v589
  %591 = vmatprep.subr.mxu0 0.0
  %v592 = vand.u32 %v560, 4294901760
  %593 = vmatpush1.msra.mxu0 %v592
  %594 = vmatprep.subr.mxu0 0.0
  %v595 = vand.u32 %v561, 4294901760
  %596 = vmatpush1.msra.mxu0 %v595
  %597 = vmatprep.subr.mxu0 0.0
  %v598 = vand.u32 %v562, 4294901760
  %599 = vmatpush1.msra.mxu0 %v598
  %600 = vmatprep.subr.mxu0 0.0
  %v601 = vand.u32 %v563, 4294901760
  %602 = vmatpush1.msra.mxu0 %v601
  %603 = vmatprep.subr.mxu0 0.0
  %v604 = vand.u32 %v564, 4294901760
  %605 = vmatpush1.msra.mxu0 %v604
  %606 = vmatprep.subr.mxu0 0.0
  %v607 = vand.u32 %v565, 4294901760
  %608 = vmatpush1.msra.mxu0 %v607
  %609 = vmatprep.subr.mxu0 0.0
  %v610 = vand.u32 %v566, 4294901760
  %611 = vmatpush1.msra.mxu0 %v610
  %612 = vmatprep.subr.mxu0 0.0
  %v613 = vand.u32 %v567, 4294901760
  %614 = vmatpush1.msra.mxu0 %v613
  %615 = vmatprep.subr.mxu0 0.0
  %v616 = vand.u32 %v568, 4294901760
  %617 = vmatpush1.msra.mxu0 %v616
  %618 = vmatprep.subr.mxu0 0.0
  %v619 = vand.u32 %v569, 4294901760
  %620 = vmatpush1.msra.mxu0 %v619
  %621 = vmatprep.subr.mxu0 0.0
  %v622 = vand.u32 %v570, 4294901760
  %623 = vmatpush1.msra.mxu0 %v622
  %624 = vmatprep.subr.mxu0 0.0
  %v625 = vand.u32 %v571, 4294901760
  %626 = vmatpush1.msra.mxu0 %v625
  %627 = vmatprep.subr.mxu0 0.0
  %628 = vmatpush1.msra.mxu0 0.0
  %629 = vmatprep.subr.mxu0 0.0
  %630 = vmatpush1.msra.mxu0 0.0
  %631 = vmatprep.subr.mxu0 0.0
  %632 = vmatpush1.msra.mxu0 0.0
  %633 = vmatprep.subr.mxu0 0.0
  %634 = vmatpush1.msra.mxu0 0.0
  %635 = vmatprep.subr.mxu0 0.0
  %636 = vmatpush1.msra.mxu0 0.0
  %637 = vmatprep.subr.mxu0 0.0
  %638 = vmatpush1.msra.mxu0 0.0
  %639 = vmatprep.subr.mxu0 0.0
  %640 = vmatpush1.msra.mxu0 0.0
  %641 = vmatprep.subr.mxu0 0.0
  %642 = vmatpush1.msra.mxu0 0.0
  %643 = vmatprep.subr.mxu0 0.0
  %644 = vmatpush1.msra.mxu0 0.0
  %645 = vmatprep.subr.mxu0 0.0
  %646 = vmatpush1.msra.mxu0 0.0
  %647 = vmatprep.subr.mxu0 0.0
  %648 = vmatpush1.msra.mxu0 0.0
  %649 = vmatprep.subr.mxu0 0.0
  %650 = vmatpush1.msra.mxu0 0.0
  %651 = vmatprep.subr.mxu0 0.0
  %652 = vmatpush1.msra.mxu0 0.0
  %653 = vmatprep.subr.mxu0 0.0
  %654 = vmatpush1.msra.mxu0 0.0
  %655 = vmatprep.subr.mxu0 0.0
  %656 = vmatpush1.msra.mxu0 0.0
  %657 = vmatprep.subr.mxu0 0.0
  %658 = vmatpush1.msra.mxu0 0.0
  %659 = vmatprep.mubr.f32.mxu0 0.0
  %v660 = vand.u32 %v555, 4294901760
  %v661 = vsub.f32 %v555, %v660
  %v662 = vand.u32 %v661, 4294901760
  %v663 = vsub.f32 %v661, %v662
  %v664 = vand.u32 %v663, 4294901760
  %665 = vmatmul.mubr.f32.gmra.mrb[0].mxu0 %v664
  %v666 = vpop.f32.mrb[0].mxu0
  %v667 = vadd.f32 %v577, %v666
  %v668 = vpop.f32.mrb[0].mxu0
  %669 = vdwg.mxu0
  %670 = vmatprep.subr.mxu0 0.0
  %v671 = vand.u32 %v556, 4294901760
  %v672 = vsub.f32 %v556, %v671
  %v673 = vand.u32 %v672, 4294901760
  %v674 = vsub.f32 %v672, %v673
  %v675 = vand.u32 %v674, 4294901760
  %676 = vmatpush1.msra.mxu0 %v675
  %677 = vmatprep.subr.mxu0 0.0
  %v678 = vand.u32 %v557, 4294901760
  %v679 = vsub.f32 %v557, %v678
  %v680 = vand.u32 %v679, 4294901760
  %v681 = vsub.f32 %v679, %v680
  %v682 = vand.u32 %v681, 4294901760
  %683 = vmatpush1.msra.mxu0 %v682
  %684 = vmatprep.subr.mxu0 0.0
  %v685 = vand.u32 %v558, 4294901760
  %v686 = vsub.f32 %v558, %v685
  %v687 = vand.u32 %v686, 4294901760
  %v688 = vsub.f32 %v686, %v687
  %v689 = vand.u32 %v688, 4294901760
  %690 = vmatpush1.msra.mxu0 %v689
  %691 = vmatprep.subr.mxu0 0.0
  %v692 = vand.u32 %v559, 4294901760
  %v693 = vsub.f32 %v559, %v692
  %v694 = vand.u32 %v693, 4294901760
  %v695 = vsub.f32 %v693, %v694
  %v696 = vand.u32 %v695, 4294901760
  %697 = vmatpush1.msra.mxu0 %v696
  %698 = vmatprep.subr.mxu0 0.0
  %v699 = vand.u32 %v560, 4294901760
  %v700 = vsub.f32 %v560, %v699
  %v701 = vand.u32 %v700, 4294901760
  %v702 = vsub.f32 %v700, %v701
  %v703 = vand.u32 %v702, 4294901760
  %704 = vmatpush1.msra.mxu0 %v703
  %705 = vmatprep.subr.mxu0 0.0
  %v706 = vand.u32 %v561, 4294901760
  %v707 = vsub.f32 %v561, %v706
  %v708 = vand.u32 %v707, 4294901760
  %v709 = vsub.f32 %v707, %v708
  %v710 = vand.u32 %v709, 4294901760
  %711 = vmatpush1.msra.mxu0 %v710
  %712 = vmatprep.subr.mxu0 0.0
  %v713 = vand.u32 %v562, 4294901760
  %v714 = vsub.f32 %v562, %v713
  %v715 = vand.u32 %v714, 4294901760
  %v716 = vsub.f32 %v714, %v715
  %v717 = vand.u32 %v716, 4294901760
  %718 = vmatpush1.msra.mxu0 %v717
  %719 = vmatprep.subr.mxu0 0.0
  %v720 = vand.u32 %v563, 4294901760
  %v721 = vsub.f32 %v563, %v720
  %v722 = vand.u32 %v721, 4294901760
  %v723 = vsub.f32 %v721, %v722
  %v724 = vand.u32 %v723, 4294901760
  %725 = vmatpush1.msra.mxu0 %v724
  %726 = vmatprep.subr.mxu0 0.0
  %v727 = vand.u32 %v564, 4294901760
  %v728 = vsub.f32 %v564, %v727
  %v729 = vand.u32 %v728, 4294901760
  %v730 = vsub.f32 %v728, %v729
  %v731 = vand.u32 %v730, 4294901760
  %732 = vmatpush1.msra.mxu0 %v731
  %733 = vmatprep.subr.mxu0 0.0
  %v734 = vand.u32 %v565, 4294901760
  %v735 = vsub.f32 %v565, %v734
  %v736 = vand.u32 %v735, 4294901760
  %v737 = vsub.f32 %v735, %v736
  %v738 = vand.u32 %v737, 4294901760
  %739 = vmatpush1.msra.mxu0 %v738
  %740 = vmatprep.subr.mxu0 0.0
  %v741 = vand.u32 %v566, 4294901760
  %v742 = vsub.f32 %v566, %v741
  %v743 = vand.u32 %v742, 4294901760
  %v744 = vsub.f32 %v742, %v743
  %v745 = vand.u32 %v744, 4294901760
  %746 = vmatpush1.msra.mxu0 %v745
  %747 = vmatprep.subr.mxu0 0.0
  %v748 = vand.u32 %v567, 4294901760
  %v749 = vsub.f32 %v567, %v748
  %v750 = vand.u32 %v749, 4294901760
  %v751 = vsub.f32 %v749, %v750
  %v752 = vand.u32 %v751, 4294901760
  %753 = vmatpush1.msra.mxu0 %v752
  %754 = vmatprep.subr.mxu0 0.0
  %v755 = vand.u32 %v568, 4294901760
  %v756 = vsub.f32 %v568, %v755
  %v757 = vand.u32 %v756, 4294901760
  %v758 = vsub.f32 %v756, %v757
  %v759 = vand.u32 %v758, 4294901760
  %760 = vmatpush1.msra.mxu0 %v759
  %761 = vmatprep.subr.mxu0 0.0
  %v762 = vand.u32 %v569, 4294901760
  %v763 = vsub.f32 %v569, %v762
  %v764 = vand.u32 %v763, 4294901760
  %v765 = vsub.f32 %v763, %v764
  %v766 = vand.u32 %v765, 4294901760
  %767 = vmatpush1.msra.mxu0 %v766
  %768 = vmatprep.subr.mxu0 0.0
  %v769 = vand.u32 %v570, 4294901760
  %v770 = vsub.f32 %v570, %v769
  %v771 = vand.u32 %v770, 4294901760
  %v772 = vsub.f32 %v770, %v771
  %v773 = vand.u32 %v772, 4294901760
  %774 = vmatpush1.msra.mxu0 %v773
  %775 = vmatprep.subr.mxu0 0.0
  %v776 = vand.u32 %v571, 4294901760
  %v777 = vsub.f32 %v571, %v776
  %v778 = vand.u32 %v777, 4294901760
  %v779 = vsub.f32 %v777, %v778
  %v780 = vand.u32 %v779, 4294901760
  %781 = vmatpush1.msra.mxu0 %v780
  %782 = vmatprep.subr.mxu0 0.0
  %783 = vmatpush1.msra.mxu0 0.0
  %784 = vmatprep.subr.mxu0 0.0
  %785 = vmatpush1.msra.mxu0 0.0
  %786 = vmatprep.subr.mxu0 0.0
  %787 = vmatpush1.msra.mxu0 0.0
  %788 = vmatprep.subr.mxu0 0.0
  %789 = vmatpush1.msra.mxu0 0.0
  %790 = vmatprep.subr.mxu0 0.0
  %791 = vmatpush1.msra.mxu0 0.0
  %792 = vmatprep.subr.mxu0 0.0
  %793 = vmatpush1.msra.mxu0 0.0
  %794 = vmatprep.subr.mxu0 0.0
  %795 = vmatpush1.msra.mxu0 0.0
  %796 = vmatprep.subr.mxu0 0.0
  %797 = vmatpush1.msra.mxu0 0.0
  %798 = vmatprep.subr.mxu0 0.0
  %799 = vmatpush1.msra.mxu0 0.0
  %800 = vmatprep.subr.mxu0 0.0
  %801 = vmatpush1.msra.mxu0 0.0
  %802 = vmatprep.subr.mxu0 0.0
  %803 = vmatpush1.msra.mxu0 0.0
  %804 = vmatprep.subr.mxu0 0.0
  %805 = vmatpush1.msra.mxu0 0.0
  %806 = vmatprep.subr.mxu0 0.0
  %807 = vmatpush1.msra.mxu0 0.0
  %808 = vmatprep.subr.mxu0 0.0
  %809 = vmatpush1.msra.mxu0 0.0
  %810 = vmatprep.subr.mxu0 0.0
  %811 = vmatpush1.msra.mxu0 0.0
  %812 = vmatprep.subr.mxu0 0.0
  %813 = vmatpush1.msra.mxu0 0.0
  %814 = vmatprep.mubr.f32.mxu0 0.0
  %v815 = vand.u32 %v555, 4294901760
  %816 = vmatmul.mubr.f32.gmra.mrb[0].mxu0 %v815
  %v817 = vpop.f32.mrb[0].mxu0
  %v818 = vadd.f32 %v667, %v817
  %v819 = vpop.f32.mrb[0].mxu0
  %820 = vdwg.mxu0
  %821 = vmatprep.subr.mxu0 0.0
  %v822 = vand.u32 %v556, 4294901760
  %v823 = vsub.f32 %v556, %v822
  %824 = vmatpush1.msra.mxu0 %v823
  %825 = vmatprep.subr.mxu0 0.0
  %v826 = vand.u32 %v557, 4294901760
  %v827 = vsub.f32 %v557, %v826
  %828 = vmatpush1.msra.mxu0 %v827
  %829 = vmatprep.subr.mxu0 0.0
  %v830 = vand.u32 %v558, 4294901760
  %v831 = vsub.f32 %v558, %v830
  %832 = vmatpush1.msra.mxu0 %v831
  %833 = vmatprep.subr.mxu0 0.0
  %v834 = vand.u32 %v559, 4294901760
  %v835 = vsub.f32 %v559, %v834
  %836 = vmatpush1.msra.mxu0 %v835
  %837 = vmatprep.subr.mxu0 0.0
  %v838 = vand.u32 %v560, 4294901760
  %v839 = vsub.f32 %v560, %v838
  %840 = vmatpush1.msra.mxu0 %v839
  %841 = vmatprep.subr.mxu0 0.0
  %v842 = vand.u32 %v561, 4294901760
  %v843 = vsub.f32 %v561, %v842
  %844 = vmatpush1.msra.mxu0 %v843
  %845 = vmatprep.subr.mxu0 0.0
  %v846 = vand.u32 %v562, 4294901760
  %v847 = vsub.f32 %v562, %v846
  %848 = vmatpush1.msra.mxu0 %v847
  %849 = vmatprep.subr.mxu0 0.0
  %v850 = vand.u32 %v563, 4294901760
  %v851 = vsub.f32 %v563, %v850
  %852 = vmatpush1.msra.mxu0 %v851
  %853 = vmatprep.subr.mxu0 0.0
  %v854 = vand.u32 %v564, 4294901760
  %v855 = vsub.f32 %v564, %v854
  %856 = vmatpush1.msra.mxu0 %v855
  %857 = vmatprep.subr.mxu0 0.0
  %v858 = vand.u32 %v565, 4294901760
  %v859 = vsub.f32 %v565, %v858
  %860 = vmatpush1.msra.mxu0 %v859
  %861 = vmatprep.subr.mxu0 0.0
  %v862 = vand.u32 %v566, 4294901760
  %v863 = vsub.f32 %v566, %v862
  %864 = vmatpush1.msra.mxu0 %v863
  %865 = vmatprep.subr.mxu0 0.0
  %v866 = vand.u32 %v567, 4294901760
  %v867 = vsub.f32 %v567, %v866
  %868 = vmatpush1.msra.mxu0 %v867
  %869 = vmatprep.subr.mxu0 0.0
  %v870 = vand.u32 %v568, 4294901760
  %v871 = vsub.f32 %v568, %v870
  %872 = vmatpush1.msra.mxu0 %v871
  %873 = vmatprep.subr.mxu0 0.0
  %v874 = vand.u32 %v569, 4294901760
  %v875 = vsub.f32 %v569, %v874
  %876 = vmatpush1.msra.mxu0 %v875
  %877 = vmatprep.subr.mxu0 0.0
  %v878 = vand.u32 %v570, 4294901760
  %v879 = vsub.f32 %v570, %v878
  %880 = vmatpush1.msra.mxu0 %v879
  %881 = vmatprep.subr.mxu0 0.0
  %v882 = vand.u32 %v571, 4294901760
  %v883 = vsub.f32 %v571, %v882
  %884 = vmatpush1.msra.mxu0 %v883
  %885 = vmatprep.subr.mxu0 0.0
  %886 = vmatpush1.msra.mxu0 0.0
  %887 = vmatprep.subr.mxu0 0.0
  %888 = vmatpush1.msra.mxu0 0.0
  %889 = vmatprep.subr.mxu0 0.0
  %890 = vmatpush1.msra.mxu0 0.0
  %891 = vmatprep.subr.mxu0 0.0
  %892 = vmatpush1.msra.mxu0 0.0
  %893 = vmatprep.subr.mxu0 0.0
  %894 = vmatpush1.msra.mxu0 0.0
  %895 = vmatprep.subr.mxu0 0.0
  %896 = vmatpush1.msra.mxu0 0.0
  %897 = vmatprep.subr.mxu0 0.0
  %898 = vmatpush1.msra.mxu0 0.0
  %899 = vmatprep.subr.mxu0 0.0
  %900 = vmatpush1.msra.mxu0 0.0
  %901 = vmatprep.subr.mxu0 0.0
  %902 = vmatpush1.msra.mxu0 0.0
  %903 = vmatprep.subr.mxu0 0.0
  %904 = vmatpush1.msra.mxu0 0.0
  %905 = vmatprep.subr.mxu0 0.0
  %906 = vmatpush1.msra.mxu0 0.0
  %907 = vmatprep.subr.mxu0 0.0
  %908 = vmatpush1.msra.mxu0 0.0
  %909 = vmatprep.subr.mxu0 0.0
  %910 = vmatpush1.msra.mxu0 0.0
  %911 = vmatprep.subr.mxu0 0.0
  %912 = vmatpush1.msra.mxu0 0.0
  %913 = vmatprep.subr.mxu0 0.0
  %914 = vmatpush1.msra.mxu0 0.0
  %915 = vmatprep.subr.mxu0 0.0
  %916 = vmatpush1.msra.mxu0 0.0
  %917 = vmatprep.mubr.f32.mxu0 0.0
  %v918 = vand.u32 %v555, 4294901760
  %v919 = vsub.f32 %v555, %v918
  %920 = vmatmul.mubr.f32.gmra.mrb[0].mxu0 %v919
  %v921 = vpop.f32.mrb[0].mxu0
  %v922 = vadd.f32 %v818, %v921
  %v923 = vpop.f32.mrb[0].mxu0
  %924 = vdwg.mxu0
  %925 = vmatprep.subr.mxu0 0.0
  %v926 = vand.u32 %v556, 4294901760
  %927 = vmatpush1.msra.mxu0 %v926
  %928 = vmatprep.subr.mxu0 0.0
  %v929 = vand.u32 %v557, 4294901760
  %930 = vmatpush1.msra.mxu0 %v929
  %931 = vmatprep.subr.mxu0 0.0
  %v932 = vand.u32 %v558, 4294901760
  %933 = vmatpush1.msra.mxu0 %v932
  %934 = vmatprep.subr.mxu0 0.0
  %v935 = vand.u32 %v559, 4294901760
  %936 = vmatpush1.msra.mxu0 %v935
  %937 = vmatprep.subr.mxu0 0.0
  %v938 = vand.u32 %v560, 4294901760
  %939 = vmatpush1.msra.mxu0 %v938
  %940 = vmatprep.subr.mxu0 0.0
  %v941 = vand.u32 %v561, 4294901760
  %942 = vmatpush1.msra.mxu0 %v941
  %943 = vmatprep.subr.mxu0 0.0
  %v944 = vand.u32 %v562, 4294901760
  %945 = vmatpush1.msra.mxu0 %v944
  %946 = vmatprep.subr.mxu0 0.0
  %v947 = vand.u32 %v563, 4294901760
  %948 = vmatpush1.msra.mxu0 %v947
  %949 = vmatprep.subr.mxu0 0.0
  %v950 = vand.u32 %v564, 4294901760
  %951 = vmatpush1.msra.mxu0 %v950
  %952 = vmatprep.subr.mxu0 0.0
  %v953 = vand.u32 %v565, 4294901760
  %954 = vmatpush1.msra.mxu0 %v953
  %955 = vmatprep.subr.mxu0 0.0
  %v956 = vand.u32 %v566, 4294901760
  %957 = vmatpush1.msra.mxu0 %v956
  %958 = vmatprep.subr.mxu0 0.0
  %v959 = vand.u32 %v567, 4294901760
  %960 = vmatpush1.msra.mxu0 %v959
  %961 = vmatprep.subr.mxu0 0.0
  %v962 = vand.u32 %v568, 4294901760
  %963 = vmatpush1.msra.mxu0 %v962
  %964 = vmatprep.subr.mxu0 0.0
  %v965 = vand.u32 %v569, 4294901760
  %966 = vmatpush1.msra.mxu0 %v965
  %967 = vmatprep.subr.mxu0 0.0
  %v968 = vand.u32 %v570, 4294901760
  %969 = vmatpush1.msra.mxu0 %v968
  %970 = vmatprep.subr.mxu0 0.0
  %v971 = vand.u32 %v571, 4294901760
  %972 = vmatpush1.msra.mxu0 %v971
  %973 = vmatprep.subr.mxu0 0.0
  %974 = vmatpush1.msra.mxu0 0.0
  %975 = vmatprep.subr.mxu0 0.0
  %976 = vmatpush1.msra.mxu0 0.0
  %977 = vmatprep.subr.mxu0 0.0
  %978 = vmatpush1.msra.mxu0 0.0
  %979 = vmatprep.subr.mxu0 0.0
  %980 = vmatpush1.msra.mxu0 0.0
  %981 = vmatprep.subr.mxu0 0.0
  %982 = vmatpush1.msra.mxu0 0.0
  %983 = vmatprep.subr.mxu0 0.0
  %984 = vmatpush1.msra.mxu0 0.0
  %985 = vmatprep.subr.mxu0 0.0
  %986 = vmatpush1.msra.mxu0 0.0
  %987 = vmatprep.subr.mxu0 0.0
  %988 = vmatpush1.msra.mxu0 0.0
  %989 = vmatprep.subr.mxu0 0.0
  %990 = vmatpush1.msra.mxu0 0.0
  %991 = vmatprep.subr.mxu0 0.0
  %992 = vmatpush1.msra.mxu0 0.0
  %993 = vmatprep.subr.mxu0 0.0
  %994 = vmatpush1.msra.mxu0 0.0
  %995 = vmatprep.subr.mxu0 0.0
  %996 = vmatpush1.msra.mxu0 0.0
  %997 = vmatprep.subr.mxu0 0.0
  %998 = vmatpush1.msra.mxu0 0.0
  %999 = vmatprep.subr.mxu0 0.0
  %1000 = vmatpush1.msra.mxu0 0.0
  %1001 = vmatprep.subr.mxu0 0.0
  %1002 = vmatpush1.msra.mxu0 0.0
  %1003 = vmatprep.subr.mxu0 0.0
  %1004 = vmatpush1.msra.mxu0 0.0
  %1005 = vmatprep.mubr.f32.mxu0 0.0
  %v1006 = vand.u32 %v555, 4294901760
  %v1007 = vsub.f32 %v555, %v1006
  %v1008 = vand.u32 %v1007, 4294901760
  %1009 = vmatmul.mubr.f32.gmra.mrb[0].mxu0 %v1008
  %v1010 = vpop.f32.mrb[0].mxu0
  %v1011 = vadd.f32 %v922, %v1010
  %v1012 = vpop.f32.mrb[0].mxu0
  %1013 = vdwg.mxu0
  %1014 = vmatprep.subr.mxu0 0.0
  %v1015 = vand.u32 %v556, 4294901760
  %v1016 = vsub.f32 %v556, %v1015
  %v1017 = vand.u32 %v1016, 4294901760
  %1018 = vmatpush1.msra.mxu0 %v1017
  %1019 = vmatprep.subr.mxu0 0.0
  %v1020 = vand.u32 %v557, 4294901760
  %v1021 = vsub.f32 %v557, %v1020
  %v1022 = vand.u32 %v1021, 4294901760
  %1023 = vmatpush1.msra.mxu0 %v1022
  %1024 = vmatprep.subr.mxu0 0.0
  %v1025 = vand.u32 %v558, 4294901760
  %v1026 = vsub.f32 %v558, %v1025
  %v1027 = vand.u32 %v1026, 4294901760
  %1028 = vmatpush1.msra.mxu0 %v1027
  %1029 = vmatprep.subr.mxu0 0.0
  %v1030 = vand.u32 %v559, 4294901760
  %v1031 = vsub.f32 %v559, %v1030
  %v1032 = vand.u32 %v1031, 4294901760
  %1033 = vmatpush1.msra.mxu0 %v1032
  %1034 = vmatprep.subr.mxu0 0.0
  %v1035 = vand.u32 %v560, 4294901760
  %v1036 = vsub.f32 %v560, %v1035
  %v1037 = vand.u32 %v1036, 4294901760
  %1038 = vmatpush1.msra.mxu0 %v1037
  %1039 = vmatprep.subr.mxu0 0.0
  %v1040 = vand.u32 %v561, 4294901760
  %v1041 = vsub.f32 %v561, %v1040
  %v1042 = vand.u32 %v1041, 4294901760
  %1043 = vmatpush1.msra.mxu0 %v1042
  %1044 = vmatprep.subr.mxu0 0.0
  %v1045 = vand.u32 %v562, 4294901760
  %v1046 = vsub.f32 %v562, %v1045
  %v1047 = vand.u32 %v1046, 4294901760
  %1048 = vmatpush1.msra.mxu0 %v1047
  %1049 = vmatprep.subr.mxu0 0.0
  %v1050 = vand.u32 %v563, 4294901760
  %v1051 = vsub.f32 %v563, %v1050
  %v1052 = vand.u32 %v1051, 4294901760
  %1053 = vmatpush1.msra.mxu0 %v1052
  %1054 = vmatprep.subr.mxu0 0.0
  %v1055 = vand.u32 %v564, 4294901760
  %v1056 = vsub.f32 %v564, %v1055
  %v1057 = vand.u32 %v1056, 4294901760
  %1058 = vmatpush1.msra.mxu0 %v1057
  %1059 = vmatprep.subr.mxu0 0.0
  %v1060 = vand.u32 %v565, 4294901760
  %v1061 = vsub.f32 %v565, %v1060
  %v1062 = vand.u32 %v1061, 4294901760
  %1063 = vmatpush1.msra.mxu0 %v1062
  %1064 = vmatprep.subr.mxu0 0.0
  %v1065 = vand.u32 %v566, 4294901760
  %v1066 = vsub.f32 %v566, %v1065
  %v1067 = vand.u32 %v1066, 4294901760
  %1068 = vmatpush1.msra.mxu0 %v1067
  %1069 = vmatprep.subr.mxu0 0.0
  %v1070 = vand.u32 %v567, 4294901760
  %v1071 = vsub.f32 %v567, %v1070
  %v1072 = vand.u32 %v1071, 4294901760
  %1073 = vmatpush1.msra.mxu0 %v1072
  %1074 = vmatprep.subr.mxu0 0.0
  %v1075 = vand.u32 %v568, 4294901760
  %v1076 = vsub.f32 %v568, %v1075
  %v1077 = vand.u32 %v1076, 4294901760
  %1078 = vmatpush1.msra.mxu0 %v1077
  %1079 = vmatprep.subr.mxu0 0.0
  %v1080 = vand.u32 %v569, 4294901760
  %v1081 = vsub.f32 %v569, %v1080
  %v1082 = vand.u32 %v1081, 4294901760
  %1083 = vmatpush1.msra.mxu0 %v1082
  %1084 = vmatprep.subr.mxu0 0.0
  %v1085 = vand.u32 %v570, 4294901760
  %v1086 = vsub.f32 %v570, %v1085
  %v1087 = vand.u32 %v1086, 4294901760
  %1088 = vmatpush1.msra.mxu0 %v1087
  %1089 = vmatprep.subr.mxu0 0.0
  %v1090 = vand.u32 %v571, 4294901760
  %v1091 = vsub.f32 %v571, %v1090
  %v1092 = vand.u32 %v1091, 4294901760
  %1093 = vmatpush1.msra.mxu0 %v1092
  %1094 = vmatprep.subr.mxu0 0.0
  %1095 = vmatpush1.msra.mxu0 0.0
  %1096 = vmatprep.subr.mxu0 0.0
  %1097 = vmatpush1.msra.mxu0 0.0
  %1098 = vmatprep.subr.mxu0 0.0
  %1099 = vmatpush1.msra.mxu0 0.0
  %1100 = vmatprep.subr.mxu0 0.0
  %1101 = vmatpush1.msra.mxu0 0.0
  %1102 = vmatprep.subr.mxu0 0.0
  %1103 = vmatpush1.msra.mxu0 0.0
  %1104 = vmatprep.subr.mxu0 0.0
  %1105 = vmatpush1.msra.mxu0 0.0
  %1106 = vmatprep.subr.mxu0 0.0
  %1107 = vmatpush1.msra.mxu0 0.0
  %1108 = vmatprep.subr.mxu0 0.0
  %1109 = vmatpush1.msra.mxu0 0.0
  %1110 = vmatprep.subr.mxu0 0.0
  %1111 = vmatpush1.msra.mxu0 0.0
  %1112 = vmatprep.subr.mxu0 0.0
  %1113 = vmatpush1.msra.mxu0 0.0
  %1114 = vmatprep.subr.mxu0 0.0
  %1115 = vmatpush1.msra.mxu0 0.0
  %1116 = vmatprep.subr.mxu0 0.0
  %1117 = vmatpush1.msra.mxu0 0.0
  %1118 = vmatprep.subr.mxu0 0.0
  %1119 = vmatpush1.msra.mxu0 0.0
  %1120 = vmatprep.subr.mxu0 0.0
  %1121 = vmatpush1.msra.mxu0 0.0
  %1122 = vmatprep.subr.mxu0 0.0
  %1123 = vmatpush1.msra.mxu0 0.0
  %1124 = vmatprep.subr.mxu0 0.0
  %1125 = vmatpush1.msra.mxu0 0.0
  %1126 = vmatprep.mubr.f32.mxu0 0.0
  %v1127 = vand.u32 %v555, 4294901760
  %1128 = vmatmul.mubr.f32.gmra.mrb[0].mxu0 %v1127
  %v1129 = vpop.f32.mrb[0].mxu0
  %v1130 = vadd.f32 %v1011, %v1129
  %v1131 = vpop.f32.mrb[0].mxu0
  %1132 = vdwg.mxu0
  %1133 = vmatprep.subr.mxu0 0.0
  %v1134 = vand.u32 %v556, 4294901760
  %1135 = vmatpush1.msra.mxu0 %v1134
  %1136 = vmatprep.subr.mxu0 0.0
  %v1137 = vand.u32 %v557, 4294901760
  %1138 = vmatpush1.msra.mxu0 %v1137
  %1139 = vmatprep.subr.mxu0 0.0
  %v1140 = vand.u32 %v558, 4294901760
  %1141 = vmatpush1.msra.mxu0 %v1140
  %1142 = vmatprep.subr.mxu0 0.0
  %v1143 = vand.u32 %v559, 4294901760
  %1144 = vmatpush1.msra.mxu0 %v1143
  %1145 = vmatprep.subr.mxu0 0.0
  %v1146 = vand.u32 %v560, 4294901760
  %1147 = vmatpush1.msra.mxu0 %v1146
  %1148 = vmatprep.subr.mxu0 0.0
  %v1149 = vand.u32 %v561, 4294901760
  %1150 = vmatpush1.msra.mxu0 %v1149
  %1151 = vmatprep.subr.mxu0 0.0
  %v1152 = vand.u32 %v562, 4294901760
  %1153 = vmatpush1.msra.mxu0 %v1152
  %1154 = vmatprep.subr.mxu0 0.0
  %v1155 = vand.u32 %v563, 4294901760
  %1156 = vmatpush1.msra.mxu0 %v1155
  %1157 = vmatprep.subr.mxu0 0.0
  %v1158 = vand.u32 %v564, 4294901760
  %1159 = vmatpush1.msra.mxu0 %v1158
  %1160 = vmatprep.subr.mxu0 0.0
  %v1161 = vand.u32 %v565, 4294901760
  %1162 = vmatpush1.msra.mxu0 %v1161
  %1163 = vmatprep.subr.mxu0 0.0
  %v1164 = vand.u32 %v566, 4294901760
  %1165 = vmatpush1.msra.mxu0 %v1164
  %1166 = vmatprep.subr.mxu0 0.0
  %v1167 = vand.u32 %v567, 4294901760
  %1168 = vmatpush1.msra.mxu0 %v1167
  %1169 = vmatprep.subr.mxu0 0.0
  %v1170 = vand.u32 %v568, 4294901760
  %1171 = vmatpush1.msra.mxu0 %v1170
  %1172 = vmatprep.subr.mxu0 0.0
  %v1173 = vand.u32 %v569, 4294901760
  %1174 = vmatpush1.msra.mxu0 %v1173
  %1175 = vmatprep.subr.mxu0 0.0
  %v1176 = vand.u32 %v570, 4294901760
  %1177 = vmatpush1.msra.mxu0 %v1176
  %1178 = vmatprep.subr.mxu0 0.0
  %v1179 = vand.u32 %v571, 4294901760
  %1180 = vmatpush1.msra.mxu0 %v1179
  %1181 = vmatprep.subr.mxu0 0.0
  %1182 = vmatpush1.msra.mxu0 0.0
  %1183 = vmatprep.subr.mxu0 0.0
  %1184 = vmatpush1.msra.mxu0 0.0
  %1185 = vmatprep.subr.mxu0 0.0
  %1186 = vmatpush1.msra.mxu0 0.0
  %1187 = vmatprep.subr.mxu0 0.0
  %1188 = vmatpush1.msra.mxu0 0.0
  %1189 = vmatprep.subr.mxu0 0.0
  %1190 = vmatpush1.msra.mxu0 0.0
  %1191 = vmatprep.subr.mxu0 0.0
  %1192 = vmatpush1.msra.mxu0 0.0
  %1193 = vmatprep.subr.mxu0 0.0
  %1194 = vmatpush1.msra.mxu0 0.0
  %1195 = vmatprep.subr.mxu0 0.0
  %1196 = vmatpush1.msra.mxu0 0.0
  %1197 = vmatprep.subr.mxu0 0.0
  %1198 = vmatpush1.msra.mxu0 0.0
  %1199 = vmatprep.subr.mxu0 0.0
  %1200 = vmatpush1.msra.mxu0 0.0
  %1201 = vmatprep.subr.mxu0 0.0
  %1202 = vmatpush1.msra.mxu0 0.0
  %1203 = vmatprep.subr.mxu0 0.0
  %1204 = vmatpush1.msra.mxu0 0.0
  %1205 = vmatprep.subr.mxu0 0.0
  %1206 = vmatpush1.msra.mxu0 0.0
  %1207 = vmatprep.subr.mxu0 0.0
  %1208 = vmatpush1.msra.mxu0 0.0
  %1209 = vmatprep.subr.mxu0 0.0
  %1210 = vmatpush1.msra.mxu0 0.0
  %1211 = vmatprep.subr.mxu0 0.0
  %1212 = vmatpush1.msra.mxu0 0.0
  %1213 = vmatprep.mubr.f32.mxu0 0.0
  %v1214 = vand.u32 %v555, 4294901760
  %1215 = vmatmul.mubr.f32.gmra.mrb[0].mxu0 %v1214
  %v1216 = vpop.f32.mrb[0].mxu0
  %v1217 = vadd.f32 %v1130, %v1216
  %v1218 = vpop.f32.mrb[0].mxu0
  %1219 = vdwg.mxu0
  %v1220 = vmax.f32 %v1217, 0.0
  %v1221 = vld [vmem:[%s5] sm:$0xff]
  %v1222 = vld [vmem:[%s5 + $0x8] sm:$0xff]
  %v1223 = vld [vmem:[%s5 + $0x10] sm:$0xff]
  %v1224 = vld [vmem:[%s5 + $0x18] sm:$0xff]
  %v1225 = vld [vmem:[%s5 + $0x20] sm:$0xff]
  %v1226 = vld [vmem:[%s5 + $0x28] sm:$0xff]
  %v1227 = vld [vmem:[%s5 + $0x30] sm:$0xff]
  %v1228 = vld [vmem:[%s5 + $0x38] sm:$0xff]
  %v1229 = vld [vmem:[%s6] sm:$0x1]
  %v1231 = vlaneseq
  %v1232 = vshrl.u32 %v1231, 7
  %v1233 = vsub.s32 0, %v1232
  %v1234 = vrot.slane %v1229, %v1233
  %vm1236 = vcmask 523264
  %v1238 = vsel %vm1236, %v1220, 0
  %1240 = vmatprep.subr.mxu0 0.0
  %v1241 = vand.u32 %v1221, 4294901760
  %1242 = vmatpush1.msra.mxu0 %v1241
  %1243 = vmatprep.subr.mxu0 0.0
  %v1244 = vand.u32 %v1222, 4294901760
  %1245 = vmatpush1.msra.mxu0 %v1244
  %1246 = vmatprep.subr.mxu0 0.0
  %v1247 = vand.u32 %v1223, 4294901760
  %1248 = vmatpush1.msra.mxu0 %v1247
  %1249 = vmatprep.subr.mxu0 0.0
  %v1250 = vand.u32 %v1224, 4294901760
  %1251 = vmatpush1.msra.mxu0 %v1250
  %1252 = vmatprep.subr.mxu0 0.0
  %v1253 = vand.u32 %v1225, 4294901760
  %1254 = vmatpush1.msra.mxu0 %v1253
  %1255 = vmatprep.subr.mxu0 0.0
  %v1256 = vand.u32 %v1226, 4294901760
  %1257 = vmatpush1.msra.mxu0 %v1256
  %1258 = vmatprep.subr.mxu0 0.0
  %v1259 = vand.u32 %v1227, 4294901760
  %1260 = vmatpush1.msra.mxu0 %v1259
  %1261 = vmatprep.subr.mxu0 0.0
  %v1262 = vand.u32 %v1228, 4294901760
  %1263 = vmatpush1.msra.mxu0 %v1262
  %1264 = vmatprep.subr.mxu0 0.0
  %1265 = vmatpush1.msra.mxu0 0.0
  %1266 = vmatprep.subr.mxu0 0.0
  %1267 = vmatpush1.msra.mxu0 0.0
  %1268 = vmatprep.subr.mxu0 0.0
  %1269 = vmatpush1.msra.mxu0 0.0
  %1270 = vmatprep.subr.mxu0 0.0
  %1271 = vmatpush1.msra.mxu0 0.0
  %1272 = vmatprep.subr.mxu0 0.0
  %1273 = vmatpush1.msra.mxu0 0.0
  %1274 = vmatprep.subr.mxu0 0.0
  %1275 = vmatpush1.msra.mxu0 0.0
  %1276 = vmatprep.subr.mxu0 0.0
  %1277 = vmatpush1.msra.mxu0 0.0
  %1278 = vmatprep.subr.mxu0 0.0
  %1279 = vmatpush1.msra.mxu0 0.0
  %1280 = vmatprep.subr.mxu0 0.0
  %1281 = vmatpush1.msra.mxu0 0.0
  %1282 = vmatprep.subr.mxu0 0.0
  %1283 = vmatpush1.msra.mxu0 0.0
  %1284 = vmatprep.subr.mxu0 0.0
  %1285 = vmatpush1.msra.mxu0 0.0
  %1286 = vmatprep.subr.mxu0 0.0
  %1287 = vmatpush1.msra.mxu0 0.0
  %1288 = vmatprep.subr.mxu0 0.0
  %1289 = vmatpush1.msra.mxu0 0.0
  %1290 = vmatprep.subr.mxu0 0.0
  %1291 = vmatpush1.msra.mxu0 0.0
  %1292 = vmatprep.subr.mxu0 0.0
  %1293 = vmatpush1.msra.mxu0 0.0
  %1294 = vmatprep.subr.mxu0 0.0
  %1295 = vmatpush1.msra.mxu0 0.0
  %1296 = vmatprep.subr.mxu0 0.0
  %1297 = vmatpush1.msra.mxu0 0.0
  %1298 = vmatprep.subr.mxu0 0.0
  %1299 = vmatpush1.msra.mxu0 0.0
  %1300 = vmatprep.subr.mxu0 0.0
  %1301 = vmatpush1.msra.mxu0 0.0
  %1302 = vmatprep.subr.mxu0 0.0
  %1303 = vmatpush1.msra.mxu0 0.0
  %1304 = vmatprep.subr.mxu0 0.0
  %1305 = vmatpush1.msra.mxu0 0.0
  %1306 = vmatprep.subr.mxu0 0.0
  %1307 = vmatpush1.msra.mxu0 0.0
  %1308 = vmatprep.subr.mxu0 0.0
  %1309 = vmatpush1.msra.mxu0 0.0
  %1310 = vmatprep.subr.mxu0 0.0
  %1311 = vmatpush1.msra.mxu0 0.0
  %1312 = vmatprep.mubr.f32.mxu0 0.0
  %v1313 = vand.u32 %v1238, 4294901760
  %v1314 = vsub.f32 %v1238, %v1313
  %v1315 = vand.u32 %v1314, 4294901760
  %v1316 = vsub.f32 %v1314, %v1315
  %v1317 = vand.u32 %v1316, 4294901760
  %1318 = vmatmul.mubr.f32.gmra.mrb[0].mxu0 %v1317
  %v1319 = vpop.f32.mrb[0].mxu0
  %v1320 = vadd.f32 %v1234, %v1319
  %v1321 = vpop.f32.mrb[0].mxu0
  %1322 = vdwg.mxu0
  %1323 = vmatprep.subr.mxu0 0.0
  %v1324 = vand.u32 %v1221, 4294901760
  %v1325 = vsub.f32 %v1221, %v1324
  %v1326 = vand.u32 %v1325, 4294901760
  %v1327 = vsub.f32 %v1325, %v1326
  %v1328 = vand.u32 %v1327, 4294901760
  %1329 = vmatpush1.msra.mxu0 %v1328
  %1330 = vmatprep.subr.mxu0 0.0
  %v1331 = vand.u32 %v1222, 4294901760
  %v1332 = vsub.f32 %v1222, %v1331
  %v1333 = vand.u32 %v1332, 4294901760
  %v1334 = vsub.f32 %v1332, %v1333
  %v1335 = vand.u32 %v1334, 4294901760
  %1336 = vmatpush1.msra.mxu0 %v1335
  %1337 = vmatprep.subr.mxu0 0.0
  %v1338 = vand.u32 %v1223, 4294901760
  %v1339 = vsub.f32 %v1223, %v1338
  %v1340 = vand.u32 %v1339, 4294901760
  %v1341 = vsub.f32 %v1339, %v1340
  %v1342 = vand.u32 %v1341, 4294901760
  %1343 = vmatpush1.msra.mxu0 %v1342
  %1344 = vmatprep.subr.mxu0 0.0
  %v1345 = vand.u32 %v1224, 4294901760
  %v1346 = vsub.f32 %v1224, %v1345
  %v1347 = vand.u32 %v1346, 4294901760
  %v1348 = vsub.f32 %v1346, %v1347
  %v1349 = vand.u32 %v1348, 4294901760
  %1350 = vmatpush1.msra.mxu0 %v1349
  %1351 = vmatprep.subr.mxu0 0.0
  %v1352 = vand.u32 %v1225, 4294901760
  %v1353 = vsub.f32 %v1225, %v1352
  %v1354 = vand.u32 %v1353, 4294901760
  %v1355 = vsub.f32 %v1353, %v1354
  %v1356 = vand.u32 %v1355, 4294901760
  %1357 = vmatpush1.msra.mxu0 %v1356
  %1358 = vmatprep.subr.mxu0 0.0
  %v1359 = vand.u32 %v1226, 4294901760
  %v1360 = vsub.f32 %v1226, %v1359
  %v1361 = vand.u32 %v1360, 4294901760
  %v1362 = vsub.f32 %v1360, %v1361
  %v1363 = vand.u32 %v1362, 4294901760
  %1364 = vmatpush1.msra.mxu0 %v1363
  %1365 = vmatprep.subr.mxu0 0.0
  %v1366 = vand.u32 %v1227, 4294901760
  %v1367 = vsub.f32 %v1227, %v1366
  %v1368 = vand.u32 %v1367, 4294901760
  %v1369 = vsub.f32 %v1367, %v1368
  %v1370 = vand.u32 %v1369, 4294901760
  %1371 = vmatpush1.msra.mxu0 %v1370
  %1372 = vmatprep.subr.mxu0 0.0
  %v1373 = vand.u32 %v1228, 4294901760
  %v1374 = vsub.f32 %v1228, %v1373
  %v1375 = vand.u32 %v1374, 4294901760
  %v1376 = vsub.f32 %v1374, %v1375
  %v1377 = vand.u32 %v1376, 4294901760
  %1378 = vmatpush1.msra.mxu0 %v1377
  %1379 = vmatprep.subr.mxu0 0.0
  %1380 = vmatpush1.msra.mxu0 0.0
  %1381 = vmatprep.subr.mxu0 0.0
  %1382 = vmatpush1.msra.mxu0 0.0
  %1383 = vmatprep.subr.mxu0 0.0
  %1384 = vmatpush1.msra.mxu0 0.0
  %1385 = vmatprep.subr.mxu0 0.0
  %1386 = vmatpush1.msra.mxu0 0.0
  %1387 = vmatprep.subr.mxu0 0.0
  %1388 = vmatpush1.msra.mxu0 0.0
  %1389 = vmatprep.subr.mxu0 0.0
  %1390 = vmatpush1.msra.mxu0 0.0
  %1391 = vmatprep.subr.mxu0 0.0
  %1392 = vmatpush1.msra.mxu0 0.0
  %1393 = vmatprep.subr.mxu0 0.0
  %1394 = vmatpush1.msra.mxu0 0.0
  %1395 = vmatprep.subr.mxu0 0.0
  %1396 = vmatpush1.msra.mxu0 0.0
  %1397 = vmatprep.subr.mxu0 0.0
  %1398 = vmatpush1.msra.mxu0 0.0
  %1399 = vmatprep.subr.mxu0 0.0
  %1400 = vmatpush1.msra.mxu0 0.0
  %1401 = vmatprep.subr.mxu0 0.0
  %1402 = vmatpush1.msra.mxu0 0.0
  %1403 = vmatprep.subr.mxu0 0.0
  %1404 = vmatpush1.msra.mxu0 0.0
  %1405 = vmatprep.subr.mxu0 0.0
  %1406 = vmatpush1.msra.mxu0 0.0
  %1407 = vmatprep.subr.mxu0 0.0
  %1408 = vmatpush1.msra.mxu0 0.0
  %1409 = vmatprep.subr.mxu0 0.0
  %1410 = vmatpush1.msra.mxu0 0.0
  %1411 = vmatprep.subr.mxu0 0.0
  %1412 = vmatpush1.msra.mxu0 0.0
  %1413 = vmatprep.subr.mxu0 0.0
  %1414 = vmatpush1.msra.mxu0 0.0
  %1415 = vmatprep.subr.mxu0 0.0
  %1416 = vmatpush1.msra.mxu0 0.0
  %1417 = vmatprep.subr.mxu0 0.0
  %1418 = vmatpush1.msra.mxu0 0.0
  %1419 = vmatprep.subr.mxu0 0.0
  %1420 = vmatpush1.msra.mxu0 0.0
  %1421 = vmatprep.subr.mxu0 0.0
  %1422 = vmatpush1.msra.mxu0 0.0
  %1423 = vmatprep.subr.mxu0 0.0
  %1424 = vmatpush1.msra.mxu0 0.0
  %1425 = vmatprep.subr.mxu0 0.0
  %1426 = vmatpush1.msra.mxu0 0.0
  %1427 = vmatprep.mubr.f32.mxu0 0.0
  %v1428 = vand.u32 %v1238, 4294901760
  %1429 = vmatmul.mubr.f32.gmra.mrb[0].mxu0 %v1428
  %v1430 = vpop.f32.mrb[0].mxu0
  %v1431 = vadd.f32 %v1320, %v1430
  %v1432 = vpop.f32.mrb[0].mxu0
  %1433 = vdwg.mxu0
  %1434 = vmatprep.subr.mxu0 0.0
  %v1435 = vand.u32 %v1221, 4294901760
  %v1436 = vsub.f32 %v1221, %v1435
  %1437 = vmatpush1.msra.mxu0 %v1436
  %1438 = vmatprep.subr.mxu0 0.0
  %v1439 = vand.u32 %v1222, 4294901760
  %v1440 = vsub.f32 %v1222, %v1439
  %1441 = vmatpush1.msra.mxu0 %v1440
  %1442 = vmatprep.subr.mxu0 0.0
  %v1443 = vand.u32 %v1223, 4294901760
  %v1444 = vsub.f32 %v1223, %v1443
  %1445 = vmatpush1.msra.mxu0 %v1444
  %1446 = vmatprep.subr.mxu0 0.0
  %v1447 = vand.u32 %v1224, 4294901760
  %v1448 = vsub.f32 %v1224, %v1447
  %1449 = vmatpush1.msra.mxu0 %v1448
  %1450 = vmatprep.subr.mxu0 0.0
  %v1451 = vand.u32 %v1225, 4294901760
  %v1452 = vsub.f32 %v1225, %v1451
  %1453 = vmatpush1.msra.mxu0 %v1452
  %1454 = vmatprep.subr.mxu0 0.0
  %v1455 = vand.u32 %v1226, 4294901760
  %v1456 = vsub.f32 %v1226, %v1455
  %1457 = vmatpush1.msra.mxu0 %v1456
  %1458 = vmatprep.subr.mxu0 0.0
  %v1459 = vand.u32 %v1227, 4294901760
  %v1460 = vsub.f32 %v1227, %v1459
  %1461 = vmatpush1.msra.mxu0 %v1460
  %1462 = vmatprep.subr.mxu0 0.0
  %v1463 = vand.u32 %v1228, 4294901760
  %v1464 = vsub.f32 %v1228, %v1463
  %1465 = vmatpush1.msra.mxu0 %v1464
  %1466 = vmatprep.subr.mxu0 0.0
  %1467 = vmatpush1.msra.mxu0 0.0
  %1468 = vmatprep.subr.mxu0 0.0
  %1469 = vmatpush1.msra.mxu0 0.0
  %1470 = vmatprep.subr.mxu0 0.0
  %1471 = vmatpush1.msra.mxu0 0.0
  %1472 = vmatprep.subr.mxu0 0.0
  %1473 = vmatpush1.msra.mxu0 0.0
  %1474 = vmatprep.subr.mxu0 0.0
  %1475 = vmatpush1.msra.mxu0 0.0
  %1476 = vmatprep.subr.mxu0 0.0
  %1477 = vmatpush1.msra.mxu0 0.0
  %1478 = vmatprep.subr.mxu0 0.0
  %1479 = vmatpush1.msra.mxu0 0.0
  %1480 = vmatprep.subr.mxu0 0.0
  %1481 = vmatpush1.msra.mxu0 0.0
  %1482 = vmatprep.subr.mxu0 0.0
  %1483 = vmatpush1.msra.mxu0 0.0
  %1484 = vmatprep.subr.mxu0 0.0
  %1485 = vmatpush1.msra.mxu0 0.0
  %1486 = vmatprep.subr.mxu0 0.0
  %1487 = vmatpush1.msra.mxu0 0.0
  %1488 = vmatprep.subr.mxu0 0.0
  %1489 = vmatpush1.msra.mxu0 0.0
  %1490 = vmatprep.subr.mxu0 0.0
  %1491 = vmatpush1.msra.mxu0 0.0
  %1492 = vmatprep.subr.mxu0 0.0
  %1493 = vmatpush1.msra.mxu0 0.0
  %1494 = vmatprep.subr.mxu0 0.0
  %1495 = vmatpush1.msra.mxu0 0.0
  %1496 = vmatprep.subr.mxu0 0.0
  %1497 = vmatpush1.msra.mxu0 0.0
  %1498 = vmatprep.subr.mxu0 0.0
  %1499 = vmatpush1.msra.mxu0 0.0
  %1500 = vmatprep.subr.mxu0 0.0
  %1501 = vmatpush1.msra.mxu0 0.0
  %1502 = vmatprep.subr.mxu0 0.0
  %1503 = vmatpush1.msra.mxu0 0.0
  %1504 = vmatprep.subr.mxu0 0.0
  %1505 = vmatpush1.msra.mxu0 0.0
  %1506 = vmatprep.subr.mxu0 0.0
  %1507 = vmatpush1.msra.mxu0 0.0
  %1508 = vmatprep.subr.mxu0 0.0
  %1509 = vmatpush1.msra.mxu0 0.0
  %1510 = vmatprep.subr.mxu0 0.0
  %1511 = vmatpush1.msra.mxu0 0.0
  %1512 = vmatprep.subr.mxu0 0.0
  %1513 = vmatpush1.msra.mxu0 0.0
  %1514 = vmatprep.mubr.f32.mxu0 0.0
  %v1515 = vand.u32 %v1238, 4294901760
  %v1516 = vsub.f32 %v1238, %v1515
  %1517 = vmatmul.mubr.f32.gmra.mrb[0].mxu0 %v1516
  %v1518 = vpop.f32.mrb[0].mxu0
  %v1519 = vadd.f32 %v1431, %v1518
  %v1520 = vpop.f32.mrb[0].mxu0
  %1521 = vdwg.mxu0
  %1522 = vmatprep.subr.mxu0 0.0
  %v1523 = vand.u32 %v1221, 4294901760
  %1524 = vmatpush1.msra.mxu0 %v1523
  %1525 = vmatprep.subr.mxu0 0.0
  %v1526 = vand.u32 %v1222, 4294901760
  %1527 = vmatpush1.msra.mxu0 %v1526
  %1528 = vmatprep.subr.mxu0 0.0
  %v1529 = vand.u32 %v1223, 4294901760
  %1530 = vmatpush1.msra.mxu0 %v1529
  %1531 = vmatprep.subr.mxu0 0.0
  %v1532 = vand.u32 %v1224, 4294901760
  %1533 = vmatpush1.msra.mxu0 %v1532
  %1534 = vmatprep.subr.mxu0 0.0
  %v1535 = vand.u32 %v1225, 4294901760
  %1536 = vmatpush1.msra.mxu0 %v1535
  %1537 = vmatprep.subr.mxu0 0.0
  %v1538 = vand.u32 %v1226, 4294901760
  %1539 = vmatpush1.msra.mxu0 %v1538
  %1540 = vmatprep.subr.mxu0 0.0
  %v1541 = vand.u32 %v1227, 4294901760
  %1542 = vmatpush1.msra.mxu0 %v1541
  %1543 = vmatprep.subr.mxu0 0.0
  %v1544 = vand.u32 %v1228, 4294901760
  %1545 = vmatpush1.msra.mxu0 %v1544
  %1546 = vmatprep.subr.mxu0 0.0
  %1547 = vmatpush1.msra.mxu0 0.0
  %1548 = vmatprep.subr.mxu0 0.0
  %1549 = vmatpush1.msra.mxu0 0.0
  %1550 = vmatprep.subr.mxu0 0.0
  %1551 = vmatpush1.msra.mxu0 0.0
  %1552 = vmatprep.subr.mxu0 0.0
  %1553 = vmatpush1.msra.mxu0 0.0
  %1554 = vmatprep.subr.mxu0 0.0
  %1555 = vmatpush1.msra.mxu0 0.0
  %1556 = vmatprep.subr.mxu0 0.0
  %1557 = vmatpush1.msra.mxu0 0.0
  %1558 = vmatprep.subr.mxu0 0.0
  %1559 = vmatpush1.msra.mxu0 0.0
  %1560 = vmatprep.subr.mxu0 0.0
  %1561 = vmatpush1.msra.mxu0 0.0
  %1562 = vmatprep.subr.mxu0 0.0
  %1563 = vmatpush1.msra.mxu0 0.0
  %1564 = vmatprep.subr.mxu0 0.0
  %1565 = vmatpush1.msra.mxu0 0.0
  %1566 = vmatprep.subr.mxu0 0.0
  %1567 = vmatpush1.msra.mxu0 0.0
  %1568 = vmatprep.subr.mxu0 0.0
  %1569 = vmatpush1.msra.mxu0 0.0
  %1570 = vmatprep.subr.mxu0 0.0
  %1571 = vmatpush1.msra.mxu0 0.0
  %1572 = vmatprep.subr.mxu0 0.0
  %1573 = vmatpush1.msra.mxu0 0.0
  %1574 = vmatprep.subr.mxu0 0.0
  %1575 = vmatpush1.msra.mxu0 0.0
  %1576 = vmatprep.subr.mxu0 0.0
  %1577 = vmatpush1.msra.mxu0 0.0
  %1578 = vmatprep.subr.mxu0 0.0
  %1579 = vmatpush1.msra.mxu0 0.0
  %1580 = vmatprep.subr.mxu0 0.0
  %1581 = vmatpush1.msra.mxu0 0.0
  %1582 = vmatprep.subr.mxu0 0.0
  %1583 = vmatpush1.msra.mxu0 0.0
  %1584 = vmatprep.subr.mxu0 0.0
  %1585 = vmatpush1.msra.mxu0 0.0
  %1586 = vmatprep.subr.mxu0 0.0
  %1587 = vmatpush1.msra.mxu0 0.0
  %1588 = vmatprep.subr.mxu0 0.0
  %1589 = vmatpush1.msra.mxu0 0.0
  %1590 = vmatprep.subr.mxu0 0.0
  %1591 = vmatpush1.msra.mxu0 0.0
  %1592 = vmatprep.subr.mxu0 0.0
  %1593 = vmatpush1.msra.mxu0 0.0
  %1594 = vmatprep.mubr.f32.mxu0 0.0
  %v1595 = vand.u32 %v1238, 4294901760
  %v1596 = vsub.f32 %v1238, %v1595
  %v1597 = vand.u32 %v1596, 4294901760
  %1598 = vmatmul.mubr.f32.gmra.mrb[0].mxu0 %v1597
  %v1599 = vpop.f32.mrb[0].mxu0
  %v1600 = vadd.f32 %v1519, %v1599
  %v1601 = vpop.f32.mrb[0].mxu0
  %1602 = vdwg.mxu0
  %1603 = vmatprep.subr.mxu0 0.0
  %v1604 = vand.u32 %v1221, 4294901760
  %v1605 = vsub.f32 %v1221, %v1604
  %v1606 = vand.u32 %v1605, 4294901760
  %1607 = vmatpush1.msra.mxu0 %v1606
  %1608 = vmatprep.subr.mxu0 0.0
  %v1609 = vand.u32 %v1222, 4294901760
  %v1610 = vsub.f32 %v1222, %v1609
  %v1611 = vand.u32 %v1610, 4294901760
  %1612 = vmatpush1.msra.mxu0 %v1611
  %1613 = vmatprep.subr.mxu0 0.0
  %v1614 = vand.u32 %v1223, 4294901760
  %v1615 = vsub.f32 %v1223, %v1614
  %v1616 = vand.u32 %v1615, 4294901760
  %1617 = vmatpush1.msra.mxu0 %v1616
  %1618 = vmatprep.subr.mxu0 0.0
  %v1619 = vand.u32 %v1224, 4294901760
  %v1620 = vsub.f32 %v1224, %v1619
  %v1621 = vand.u32 %v1620, 4294901760
  %1622 = vmatpush1.msra.mxu0 %v1621
  %1623 = vmatprep.subr.mxu0 0.0
  %v1624 = vand.u32 %v1225, 4294901760
  %v1625 = vsub.f32 %v1225, %v1624
  %v1626 = vand.u32 %v1625, 4294901760
  %1627 = vmatpush1.msra.mxu0 %v1626
  %1628 = vmatprep.subr.mxu0 0.0
  %v1629 = vand.u32 %v1226, 4294901760
  %v1630 = vsub.f32 %v1226, %v1629
  %v1631 = vand.u32 %v1630, 4294901760
  %1632 = vmatpush1.msra.mxu0 %v1631
  %1633 = vmatprep.subr.mxu0 0.0
  %v1634 = vand.u32 %v1227, 4294901760
  %v1635 = vsub.f32 %v1227, %v1634
  %v1636 = vand.u32 %v1635, 4294901760
  %1637 = vmatpush1.msra.mxu0 %v1636
  %1638 = vmatprep.subr.mxu0 0.0
  %v1639 = vand.u32 %v1228, 4294901760
  %v1640 = vsub.f32 %v1228, %v1639
  %v1641 = vand.u32 %v1640, 4294901760
  %1642 = vmatpush1.msra.mxu0 %v1641
  %1643 = vmatprep.subr.mxu0 0.0
  %1644 = vmatpush1.msra.mxu0 0.0
  %1645 = vmatprep.subr.mxu0 0.0
  %1646 = vmatpush1.msra.mxu0 0.0
  %1647 = vmatprep.subr.mxu0 0.0
  %1648 = vmatpush1.msra.mxu0 0.0
  %1649 = vmatprep.subr.mxu0 0.0
  %1650 = vmatpush1.msra.mxu0 0.0
  %1651 = vmatprep.subr.mxu0 0.0
  %1652 = vmatpush1.msra.mxu0 0.0
  %1653 = vmatprep.subr.mxu0 0.0
  %1654 = vmatpush1.msra.mxu0 0.0
  %1655 = vmatprep.subr.mxu0 0.0
  %1656 = vmatpush1.msra.mxu0 0.0
  %1657 = vmatprep.subr.mxu0 0.0
  %1658 = vmatpush1.msra.mxu0 0.0
  %1659 = vmatprep.subr.mxu0 0.0
  %1660 = vmatpush1.msra.mxu0 0.0
  %1661 = vmatprep.subr.mxu0 0.0
  %1662 = vmatpush1.msra.mxu0 0.0
  %1663 = vmatprep.subr.mxu0 0.0
  %1664 = vmatpush1.msra.mxu0 0.0
  %1665 = vmatprep.subr.mxu0 0.0
  %1666 = vmatpush1.msra.mxu0 0.0
  %1667 = vmatprep.subr.mxu0 0.0
  %1668 = vmatpush1.msra.mxu0 0.0
  %1669 = vmatprep.subr.mxu0 0.0
  %1670 = vmatpush1.msra.mxu0 0.0
  %1671 = vmatprep.subr.mxu0 0.0
  %1672 = vmatpush1.msra.mxu0 0.0
  %1673 = vmatprep.subr.mxu0 0.0
  %1674 = vmatpush1.msra.mxu0 0.0
  %1675 = vmatprep.subr.mxu0 0.0
  %1676 = vmatpush1.msra.mxu0 0.0
  %1677 = vmatprep.subr.mxu0 0.0
  %1678 = vmatpush1.msra.mxu0 0.0
  %1679 = vmatprep.subr.mxu0 0.0
  %1680 = vmatpush1.msra.mxu0 0.0
  %1681 = vmatprep.subr.mxu0 0.0
  %1682 = vmatpush1.msra.mxu0 0.0
  %1683 = vmatprep.subr.mxu0 0.0
  %1684 = vmatpush1.msra.mxu0 0.0
  %1685 = vmatprep.subr.mxu0 0.0
  %1686 = vmatpush1.msra.mxu0 0.0
  %1687 = vmatprep.subr.mxu0 0.0
  %1688 = vmatpush1.msra.mxu0 0.0
  %1689 = vmatprep.subr.mxu0 0.0
  %1690 = vmatpush1.msra.mxu0 0.0
  %1691 = vmatprep.mubr.f32.mxu0 0.0
  %v1692 = vand.u32 %v1238, 4294901760
  %1693 = vmatmul.mubr.f32.gmra.mrb[0].mxu0 %v1692
  %v1694 = vpop.f32.mrb[0].mxu0
  %v1695 = vadd.f32 %v1600, %v1694
  %v1696 = vpop.f32.mrb[0].mxu0
  %1697 = vdwg.mxu0
  %1698 = vmatprep.subr.mxu0 0.0
  %v1699 = vand.u32 %v1221, 4294901760
  %1700 = vmatpush1.msra.mxu0 %v1699
  %1701 = vmatprep.subr.mxu0 0.0
  %v1702 = vand.u32 %v1222, 4294901760
  %1703 = vmatpush1.msra.mxu0 %v1702
  %1704 = vmatprep.subr.mxu0 0.0
  %v1705 = vand.u32 %v1223, 4294901760
  %1706 = vmatpush1.msra.mxu0 %v1705
  %1707 = vmatprep.subr.mxu0 0.0
  %v1708 = vand.u32 %v1224, 4294901760
  %1709 = vmatpush1.msra.mxu0 %v1708
  %1710 = vmatprep.subr.mxu0 0.0
  %v1711 = vand.u32 %v1225, 4294901760
  %1712 = vmatpush1.msra.mxu0 %v1711
  %1713 = vmatprep.subr.mxu0 0.0
  %v1714 = vand.u32 %v1226, 4294901760
  %1715 = vmatpush1.msra.mxu0 %v1714
  %1716 = vmatprep.subr.mxu0 0.0
  %v1717 = vand.u32 %v1227, 4294901760
  %1718 = vmatpush1.msra.mxu0 %v1717
  %1719 = vmatprep.subr.mxu0 0.0
  %v1720 = vand.u32 %v1228, 4294901760
  %1721 = vmatpush1.msra.mxu0 %v1720
  %1722 = vmatprep.subr.mxu0 0.0
  %1723 = vmatpush1.msra.mxu0 0.0
  %1724 = vmatprep.subr.mxu0 0.0
  %1725 = vmatpush1.msra.mxu0 0.0
  %1726 = vmatprep.subr.mxu0 0.0
  %1727 = vmatpush1.msra.mxu0 0.0
  %1728 = vmatprep.subr.mxu0 0.0
  %1729 = vmatpush1.msra.mxu0 0.0
  %1730 = vmatprep.subr.mxu0 0.0
  %1731 = vmatpush1.msra.mxu0 0.0
  %1732 = vmatprep.subr.mxu0 0.0
  %1733 = vmatpush1.msra.mxu0 0.0
  %1734 = vmatprep.subr.mxu0 0.0
  %1735 = vmatpush1.msra.mxu0 0.0
  %1736 = vmatprep.subr.mxu0 0.0
  %1737 = vmatpush1.msra.mxu0 0.0
  %1738 = vmatprep.subr.mxu0 0.0
  %1739 = vmatpush1.msra.mxu0 0.0
  %1740 = vmatprep.subr.mxu0 0.0
  %1741 = vmatpush1.msra.mxu0 0.0
  %1742 = vmatprep.subr.mxu0 0.0
  %1743 = vmatpush1.msra.mxu0 0.0
  %1744 = vmatprep.subr.mxu0 0.0
  %1745 = vmatpush1.msra.mxu0 0.0
  %1746 = vmatprep.subr.mxu0 0.0
  %1747 = vmatpush1.msra.mxu0 0.0
  %1748 = vmatprep.subr.mxu0 0.0
  %1749 = vmatpush1.msra.mxu0 0.0
  %1750 = vmatprep.subr.mxu0 0.0
  %1751 = vmatpush1.msra.mxu0 0.0
  %1752 = vmatprep.subr.mxu0 0.0
  %1753 = vmatpush1.msra.mxu0 0.0
  %1754 = vmatprep.subr.mxu0 0.0
  %1755 = vmatpush1.msra.mxu0 0.0
  %1756 = vmatprep.subr.mxu0 0.0
  %1757 = vmatpush1.msra.mxu0 0.0
  %1758 = vmatprep.subr.mxu0 0.0
  %1759 = vmatpush1.msra.mxu0 0.0
  %1760 = vmatprep.subr.mxu0 0.0
  %1761 = vmatpush1.msra.mxu0 0.0
  %1762 = vmatprep.subr.mxu0 0.0
  %1763 = vmatpush1.msra.mxu0 0.0
  %1764 = vmatprep.subr.mxu0 0.0
  %1765 = vmatpush1.msra.mxu0 0.0
  %1766 = vmatprep.subr.mxu0 0.0
  %1767 = vmatpush1.msra.mxu0 0.0
  %1768 = vmatprep.subr.mxu0 0.0
  %1769 = vmatpush1.msra.mxu0 0.0
  %1770 = vmatprep.mubr.f32.mxu0 0.0
  %v1771 = vand.u32 %v1238, 4294901760
  %1772 = vmatmul.mubr.f32.gmra.mrb[0].mxu0 %v1771
  %v1773 = vpop.f32.mrb[0].mxu0
  %v1774 = vadd.f32 %v1695, %v1773
  %v1775 = vpop.f32.mrb[0].mxu0
  %1776 = vdwg.mxu0
  %v1777 = vsub.f32 0.0, %v1774
  %v1778 = vmul.f32 %v1777, 1.442695
  %v1779 = vpow.pop %v1778
  %v1780 = vadd.f32 %v1779, 1.0
  %v1781 = vrcp.pop %v1780
  %v1782 = vmul.f32 1.0, %v1781
  %vm1783 = vcmask 130048
  %1784 = vst.msk [vmem:[%s7] sm:$0xff] %vm1783, %v1782
  // Predicated region
  $region30: #{personalized_behavior_classifier.1} parent=0 // pred_check
    _
  $region31: #{personalized_behavior_classifier.1} parent=0 // pred_check_branch
    %1786 = sbr.rel (0) target = $region33
  $region32: #{personalized_behavior_classifier.1} parent=0 // pred_region
    _
  $region33: #{personalized_behavior_classifier.1} parent=0 // pred_fallthru
    _
  // Predicated region
  $region34: #{personalized_behavior_classifier.1} parent=0 // pred_check
    _
  $region35: #{personalized_behavior_classifier.1} parent=0 // pred_check_branch
    %1788 = sbr.rel (0) target = $region37
  $region36: #{personalized_behavior_classifier.1} parent=0 // pred_region
    _
  $region37: #{personalized_behavior_classifier.1} parent=0 // pred_fallthru
    _

</llo_original>
